<compile_context>
chip_gen: v6e
topology: v6e:2x2x1
jax: 0.10.0
libtpu: 0.0.40
codegen_flags: <defaults>
</compile_context>

<pallas_src>
import functools

import jax
import jax.numpy as jnp
from jax.experimental import pallas as pl
from jax.experimental.pallas import tpu as pltpu

_VMEM_LIMIT = 32 * 1024 * 1024
_HIGHEST = jax.lax.Precision.HIGHEST
_LN_EPS = 1e-5


# --------------------------------------------------------------------------
# shared math helpers (used by both the kernel and the pure-JAX reference)
# --------------------------------------------------------------------------
def _gelu_tanh(x):
    # TODO(synk): torch nn.GELU() is erf-exact; tanh approximation used here for
    # robust EUP lowering.  The pure-JAX reference uses the same form.
    c = 0.7978845608028654  # sqrt(2/pi)
    return 0.5 * x * (1.0 + jnp.tanh(c * (x + 0.044715 * x * x * x)))


def _ln_centered(x, eps=_LN_EPS):
    """LayerNorm without affine (gamma/beta folded into the next matmul)."""
    mu = jnp.mean(x, axis=-1, keepdims=True)
    xc = x - mu
    var = jnp.mean(xc * xc, axis=-1, keepdims=True)   # centered -> never negative
    return xc * jax.lax.rsqrt(var + eps)


def _ln_affine(x, g, b, eps=_LN_EPS):
    return _ln_centered(x, eps) * g + b


# --------------------------------------------------------------------------
# fused transformer-stack kernel: one (batch, layer) grid step
# --------------------------------------------------------------------------
def _sit_layers_kernel(x0_ref, wqkv_ref, bqkv_ref, wout_ref, bout_ref,
                       wff1_ref, bff1_ref, wff2_ref, bff2_ref,
                       x_ref, attn_ref,
                       *, seq_len, heads, dim_head, scale, mxu_dtype):
    exact = mxu_dtype == jnp.float32

    def mm(a, b, dims=((1,), (0,))):
        dn = (dims, ((), ()))
        if exact:
            return jax.lax.dot_general(a, b, dn, precision=_HIGHEST,
                                       preferred_element_type=jnp.float32)
        return jax.lax.dot_general(a.astype(mxu_dtype), b.astype(mxu_dtype),
                                   dn, preferred_element_type=jnp.float32)

    layer = pl.program_id(1)

    @pl.when(layer == 0)
    def _():
        x_ref[...] = x0_ref[...]

    inner = heads * dim_head
    x = x_ref[...]                                          # (Sp, D) f32, VMEM-resident

    # ---- PreNorm (gamma/beta folded into wqkv/bqkv) + qkv projection -------
    qkv = mm(_ln_centered(x), wqkv_ref[0]) + bqkv_ref[0]    # (Sp, 3*inner) f32

    # ---- multi-head attention: all heads this step, lane-dense output ------
    sp = x.shape[0]
    if sp != seq_len:  # padded key positions must receive zero softmax weight
        key_ok = jax.lax.broadcasted_iota(jnp.int32, (sp, sp), 1) < seq_len
    for h in range(heads):
        q = qkv[:, h * dim_head:(h + 1) * dim_head]
        k = qkv[:, inner + h * dim_head:inner + (h + 1) * dim_head]
        v = qkv[:, 2 * inner + h * dim_head:2 * inner + (h + 1) * dim_head]
        s = mm(q, k, dims=((1,), (1,))) * scale             # q @ k^T  (Sp, Sp)
        if sp != seq_len:
            s = jnp.where(key_ok, s, -1e30)
        s = s - jnp.max(s, axis=-1, keepdims=True)
        p = jnp.exp(s)
        p = p / jnp.sum(p, axis=-1, keepdims=True)
        attn_ref[:, h * dim_head:(h + 1) * dim_head] = mm(p, v)

    # ---- output projection + residual --------------------------------------
    x = mm(attn_ref[...], wout_ref[0]) + bout_ref[0] + x

    # ---- PreNorm (folded) + FeedForward + residual --------------------------
    h1 = _gelu_tanh(mm(_ln_centered(x), wff1_ref[0]) + bff1_ref[0])
    x = mm(h1, wff2_ref[0]) + bff2_ref[0] + x

    x_ref[...] = x


# --------------------------------------------------------------------------
# wrapper: fold LN affine into weights, stack per-layer params, call the kernel
# --------------------------------------------------------------------------
def _fold_ln_into_matmul(gamma, beta, w, bias=None):
    """LN(x; g, b) @ W + bias  ==  LN_noaffine(x) @ (diag(g)·W) + (b·W + bias)."""
    w_f = gamma[:, None] * w
    b_f = jnp.dot(beta, w, precision=_HIGHEST)
    if bias is not None:
        b_f = b_f + bias
    return w_f, b_f


def _stack_layer_params(params, mxu_dtype):
    wqkv, bqkv, wout, bout = [], [], [], []
    wff1, bff1, wff2, bff2 = [], [], [], []
    for p in params["layers"]:
        w, b = _fold_ln_into_matmul(p["ln1_g"], p["ln1_b"], p["w_qkv"])
        wqkv.append(w); bqkv.append(b)
        wout.append(p["w_out"]); bout.append(p["b_out"])
        w, b = _fold_ln_into_matmul(p["ln2_g"], p["ln2_b"], p["w_ff1"], p["b_ff1"])
        wff1.append(w); bff1.append(b)
        wff2.append(p["w_ff2"]); bff2.append(p["b_ff2"])
    w_ = lambda xs: jnp.stack(xs).astype(mxu_dtype)               # MXU operands
    b_ = lambda xs: jnp.stack(xs)[:, None, :].astype(jnp.float32)  # f32 epilogue
    return (w_(wqkv), b_(bqkv), w_(wout), b_(bout),
            w_(wff1), b_(bff1), w_(wff2), b_(bff2))


def transformer_stack(x, params, *, heads, dim_head, mxu_dtype):
    """Runs the whole transformer depth in a single pallas_call."""
    B, S, D = x.shape
    depth = len(params["layers"])
    inner = heads * dim_head
    mlp_dim = params["layers"][0]["w_ff1"].shape[-1]
    assert inner == D, "residual stream requires heads * dim_head == dim"

    sp = 8 * pl.cdiv(S, 8)                     # sublane-aligned tokens per batch
    x0 = jnp.pad(x.astype(jnp.float32), ((0, 0), (0, sp - S), (0, 0)))
    x0 = x0.reshape(B * sp, D)

    weights = _stack_layer_params(params, mxu_dtype)

    kernel = functools.partial(
        _sit_layers_kernel, seq_len=S, heads=heads, dim_head=dim_head,
        scale=dim_head ** -0.5, mxu_dtype=mxu_dtype)

    x_spec = pl.BlockSpec((sp, D), lambda b, l: (b, 0))

    def w_spec(*shape):
        return pl.BlockSpec((1,) + shape, lambda b, l: (l, 0, 0))

    out = pl.pallas_call(
        kernel,
        out_shape=jax.ShapeDtypeStruct((B * sp, D), jnp.float32),
        grid_spec=pltpu.PrefetchScalarGridSpec(
            num_scalar_prefetch=0,
            grid=(B, depth),                    # batch parallel, layers sequential
            in_specs=[
                x_spec,
                w_spec(D, 3 * inner), w_spec(1, 3 * inner),
                w_spec(inner, D), w_spec(1, D),
                w_spec(D, mlp_dim), w_spec(1, mlp_dim),
                w_spec(mlp_dim, D), w_spec(1, D),
            ],
            out_specs=x_spec,
            scratch_shapes=[pltpu.VMEM((sp, inner), jnp.float32)],
        ),
        compiler_params=pltpu.CompilerParams(
            dimension_semantics=("parallel", "arbitrary"),
            vmem_limit_bytes=_VMEM_LIMIT,
        ),
    )(x0, *weights)
    return out.reshape(B, sp, D)[:, :S]


# --------------------------------------------------------------------------
# SiT forward (eval mode: all dropouts have p=0 -> identity)
# --------------------------------------------------------------------------
def sit_forward(ecg, params, *, patch_len, heads, dim_head,
                pool="cls", mxu_dtype=jnp.bfloat16):
    B, C, L = ecg.shape
    n = L // patch_len
    D = params["pos_emb"].shape[-1]

    # Patch embedding 'b c (n p) -> b n (p c)' + Linear, cls token, pos emb.
    # Tiny matmul (12 x 360 x 128) -> plain XLA per the review.
    patches = (ecg.reshape(B, C, n, patch_len).transpose(0, 2, 3, 1)
                  .reshape(B, n, patch_len * C))
    x = jnp.dot(patches, params["w_pe"], precision=_HIGHEST) + params["b_pe"]
    cls = jnp.broadcast_to(params["cls_token"], (B, 1, D))
    x = jnp.concatenate([cls, x], axis=1) + params["pos_emb"]
    # emb dropout p=0 -> identity

    # Whole transformer stack in ONE fused Pallas kernel.
    x = transformer_stack(x, params, heads=heads, dim_head=dim_head,
                          mxu_dtype=mxu_dtype)

    # NOTE: torch computes z = x.sum(dim=2) but never uses it; omitted.
    pooled = x.mean(axis=1) if pool == "mean" else x[:, 0]
    # mlp_head (2 x 128 x num_classes=5: lane-sparse output) -> plain XLA.
    h = _ln_affine(pooled, params["lnh_g"], params["lnh_b"])
    return jnp.dot(h, params["w_head"], precision=_HIGHEST) + params["b_head"]


# --------------------------------------------------------------------------
# params + pure-JAX reference
# --------------------------------------------------------------------------
def init_params(key, *, num_classes, channels, patch_len, num_patches, dim,
                depth, heads, dim_head, mlp_dim):
    patch_dim = channels * patch_len
    inner = heads * dim_head
    keys = iter(jax.random.split(key, 64))
    nk = lambda: next(keys)

    def dense(fan_in, shape):
        return jax.random.normal(nk(), shape, jnp.float32) / jnp.sqrt(fan_in)

    def affine(d):  # randomized so the folded gamma/beta path is exercised
        return (1.0 + 0.1 * jax.random.normal(nk(), (d,), jnp.float32),
                0.1 * jax.random.normal(nk(), (d,), jnp.float32))

    params = {
        "w_pe": dense(patch_dim, (patch_dim, dim)),
        "b_pe": 0.02 * jax.random.normal(nk(), (dim,), jnp.float32),
        "cls_token": jax.random.normal(nk(), (1, 1, dim), jnp.float32),
        "pos_emb": jax.random.normal(nk(), (1, num_patches + 1, dim), jnp.float32),
        "layers": [],
    }
    for _ in range(depth):
        g1, b1 = affine(dim)
        g2, b2 = affine(dim)
        params["layers"].append({
            "ln1_g": g1, "ln1_b": b1,
            "w_qkv": dense(dim, (dim, 3 * inner)),
            "w_out": dense(inner, (inner, dim)),
            "b_out": 0.02 * jax.random.normal(nk(), (dim,), jnp.float32),
            "ln2_g": g2, "ln2_b": b2,
            "w_ff1": dense(dim, (dim, mlp_dim)),
            "b_ff1": 0.02 * jax.random.normal(nk(), (mlp_dim,), jnp.float32),
            "w_ff2": dense(mlp_dim, (mlp_dim, dim)),
            "b_ff2": 0.02 * jax.random.normal(nk(), (dim,), jnp.float32),
        })
    gh, bh = affine(dim)
    params["lnh_g"], params["lnh_b"] = gh, bh
    params["w_head"] = dense(dim, (dim, num_classes))
    params["b_head"] = 0.02 * jax.random.normal(nk(), (num_classes,), jnp.float32)
    return params


def reference_forward(ecg, params, *, patch_len, heads, dim_head):
    B, C, L = ecg.shape
    n = L // patch_len
    D = params["pos_emb"].shape[-1]
    scale = dim_head ** (-0.5)
    x = (ecg.reshape(B, C, n, patch_len).transpose(0, 2, 3, 1)
            .reshape(B, n, patch_len * C))
    x = jnp.dot(x, params["w_pe"], precision=_HIGHEST) + params["b_pe"]
    cls = jnp.broadcast_to(params["cls_token"], (B, 1, D))
    x = jnp.concatenate([cls, x], axis=1) + params["pos_emb"]
    for p in params["layers"]:
        h = _ln_affine(x, p["ln1_g"], p["ln1_b"])
        qkv = jnp.dot(h, p["w_qkv"], precision=_HIGHEST)
        q, k, v = jnp.split(qkv, 3, axis=-1)
        sh = lambda t: t.reshape(B, -1, heads, dim_head).transpose(0, 2, 1, 3)
        q, k, v = sh(q), sh(k), sh(v)
        dots = jnp.einsum("bhqd,bhkd->bhqk", q, k, precision=_HIGHEST) * scale
        attn = jax.nn.softmax(dots, axis=-1)
        o = jnp.einsum("bhqk,bhkd->bhqd", attn, v, precision=_HIGHEST)
        o = o.transpose(0, 2, 1, 3).reshape(B, -1, heads * dim_head)
        x = jnp.dot(o, p["w_out"], precision=_HIGHEST) + p["b_out"] + x
        h = _ln_affine(x, p["ln2_g"], p["ln2_b"])
        h = _gelu_tanh(jnp.dot(h, p["w_ff1"], precision=_HIGHEST) + p["b_ff1"])
        x = jnp.dot(h, p["w_ff2"], precision=_HIGHEST) + p["b_ff2"] + x
    pooled = x[:, 0]
    h = _ln_affine(pooled, params["lnh_g"], params["lnh_b"])
    return jnp.dot(h, params["w_head"], precision=_HIGHEST) + params["b_head"]


# --------------------------------------------------------------------------
# demo
# --------------------------------------------------------------------------
if __name__ == "__main__":
    # Small-but-faithful SiT config (module defaults; depth trimmed to 2).
    B, CHANNELS, SIGNAL_LEN, PATCH_LEN = 2, 12, 180, 30
    DIM, DEPTH, HEADS, DIM_HEAD, MLP_DIM, NUM_CLASSES = 128, 2, 2, 64, 256, 5
    NUM_PATCHES = SIGNAL_LEN // PATCH_LEN

    key = jax.random.PRNGKey(0)
    k_data, k_params = jax.random.split(key)
    ecg = jax.random.normal(k_data, (B, CHANNELS, SIGNAL_LEN), dtype=jnp.float32)
    params = init_params(k_params, num_classes=NUM_CLASSES, channels=CHANNELS,
                         patch_len=PATCH_LEN, num_patches=NUM_PATCHES, dim=DIM,
                         depth=DEPTH, heads=HEADS, dim_head=DIM_HEAD,
                         mlp_dim=MLP_DIM)

    fwd = functools.partial(sit_forward, patch_len=PATCH_LEN, heads=HEADS,
                            dim_head=DIM_HEAD)
    # Production path: bf16 MXU operands, f32 accumulation / epilogue math.
    out_bf16 = jax.jit(functools.partial(fwd, mxu_dtype=jnp.bfloat16))(ecg, params)
    # Exact path: full-precision f32 matmuls (tight parity check of kernel math).
    out_f32 = jax.jit(functools.partial(fwd, mxu_dtype=jnp.float32))(ecg, params)
    jax.block_until_ready((out_bf16, out_f32))

    ref = reference_forward(ecg, params, patch_len=PATCH_LEN, heads=HEADS,
                            dim_head=DIM_HEAD)
    assert out_bf16.shape == (B, NUM_CLASSES), out_bf16.shape
    assert out_f32.shape == (B, NUM_CLASSES), out_f32.shape

    err_f32 = float(jnp.max(jnp.abs(out_f32 - ref)))
    err_bf16 = float(jnp.max(jnp.abs(out_bf16 - ref)))
    assert jnp.allclose(out_f32, ref, atol=2e-3, rtol=2e-3), (
        f"f32 path max abs err {err_f32}")
    assert jnp.allclose(out_bf16, ref, atol=8e-2, rtol=8e-2), (
        f"bf16 path max abs err {err_bf16}")
    print("KERNEL_OK")
</pallas_src>

<mosaic_0001>
module attributes {stable_mosaic.version = 11 : i64} {
  func.func @_sit_layers_kernel(%arg0: i32, %arg1: i32, %arg2: memref<8x128xf32, #tpu.memory_space<vmem>>, %arg3: memref<1x128x384xbf16, #tpu.memory_space<vmem>>, %arg4: memref<1x1x384xf32, #tpu.memory_space<vmem>>, %arg5: memref<1x128x128xbf16, #tpu.memory_space<vmem>>, %arg6: memref<1x1x128xf32, #tpu.memory_space<vmem>>, %arg7: memref<1x128x256xbf16, #tpu.memory_space<vmem>>, %arg8: memref<1x1x256xf32, #tpu.memory_space<vmem>>, %arg9: memref<1x256x128xbf16, #tpu.memory_space<vmem>>, %arg10: memref<1x1x128xf32, #tpu.memory_space<vmem>>, %arg11: memref<8x128xf32, #tpu.memory_space<vmem>>, %arg12: memref<8x128xf32, #tpu.memory_space<vmem>>) attributes {dimension_semantics = [#tpu.dimension_semantics<parallel>, #tpu.dimension_semantics<arbitrary>], iteration_bounds = array<i64: 2, 2>, scalar_prefetch = 0 : i64, scratch_operands = 1 : i64, tpu.core_type = #tpu.core_type<tc>, window_params = [{transform_indices = @transform_0, window_bounds = array<i64: 8, 128>}, {transform_indices = @transform_1, window_bounds = array<i64: 1, 128, 384>}, {transform_indices = @transform_2, window_bounds = array<i64: 1, 1, 384>}, {transform_indices = @transform_3, window_bounds = array<i64: 1, 128, 128>}, {transform_indices = @transform_4, window_bounds = array<i64: 1, 1, 128>}, {transform_indices = @transform_5, window_bounds = array<i64: 1, 128, 256>}, {transform_indices = @transform_6, window_bounds = array<i64: 1, 1, 256>}, {transform_indices = @transform_7, window_bounds = array<i64: 1, 256, 128>}, {transform_indices = @transform_8, window_bounds = array<i64: 1, 1, 128>}, {transform_indices = @transform_9, window_bounds = array<i64: 8, 128>}]} {
    %c0_i32 = arith.constant 0 : i32
    %0 = arith.cmpi eq, %arg1, %c0_i32 : i32
    %1 = arith.extui %0 : i1 to i32
    %c0_i32_0 = arith.constant 0 : i32
    %2 = arith.cmpi ne, %1, %c0_i32_0 : i32
    scf.if %2 {
      %c0_62 = arith.constant 0 : index
      %c0_63 = arith.constant 0 : index
      %134 = vector.load %arg2[%c0_62, %c0_63] : memref<8x128xf32, #tpu.memory_space<vmem>>, vector<8x128xf32>
      %c0_64 = arith.constant 0 : index
      %c0_65 = arith.constant 0 : index
      %135 = vector.load %arg11[%c0_64, %c0_65] : memref<8x128xf32, #tpu.memory_space<vmem>>, vector<8x128xf32>
      tpu.vector_store %arg11[%c0_64, %c0_65], %134 {strides = array<i32>} : memref<8x128xf32, #tpu.memory_space<vmem>>, vector<8x128xf32>,
    } else {
    }
    %c0 = arith.constant 0 : index
    %c0_1 = arith.constant 0 : index
    %3 = vector.load %arg11[%c0, %c0_1] : memref<8x128xf32, #tpu.memory_space<vmem>>, vector<8x128xf32>
    %cst = arith.constant dense<0.000000e+00> : vector<8xf32>
    %4 = vector.multi_reduction <add>, %3, %cst [1] : vector<8x128xf32> to vector<8xf32>
    %5 = vector.shape_cast %4 : vector<8xf32> to vector<8x1xf32>
    %cst_2 = arith.constant 1.280000e+02 : f32
    %6 = vector.broadcast %cst_2 : f32 to vector<8x1xf32>
    %7 = arith.divf %5, %6 : vector<8x1xf32>
    %8 = vector.broadcast %7 : vector<8x1xf32> to vector<8x128xf32>
    %9 = arith.subf %3, %8 : vector<8x128xf32>
    %10 = arith.mulf %9, %9 : vector<8x128xf32>
    %cst_3 = arith.constant dense<0.000000e+00> : vector<8xf32>
    %11 = vector.multi_reduction <add>, %10, %cst_3 [1] : vector<8x128xf32> to vector<8xf32>
    %12 = vector.shape_cast %11 : vector<8xf32> to vector<8x1xf32>
    %cst_4 = arith.constant 1.280000e+02 : f32
    %13 = vector.broadcast %cst_4 : f32 to vector<8x1xf32>
    %14 = arith.divf %12, %13 : vector<8x1xf32>
    %cst_5 = arith.constant 9.99999974E-6 : f32
    %15 = vector.broadcast %cst_5 : f32 to vector<8x1xf32>
    %16 = arith.addf %14, %15 : vector<8x1xf32>
    %17 = math.rsqrt %16 : vector<8x1xf32>
    %18 = vector.broadcast %17 : vector<8x1xf32> to vector<8x128xf32>
    %19 = arith.mulf %9, %18 : vector<8x128xf32>
    %c0_6 = arith.constant 0 : index
    %c0_7 = arith.constant 0 : index
    %c0_8 = arith.constant 0 : index
    %20 = vector.load %arg3[%c0_6, %c0_7, %c0_8] : memref<1x128x384xbf16, #tpu.memory_space<vmem>>, vector<1x128x384xbf16>
    %21 = vector.shape_cast %20 : vector<1x128x384xbf16> to vector<128x384xbf16>
    %22 = arith.truncf %19 : vector<8x128xf32> to vector<8x128xbf16>
    %cst_9 = arith.constant dense<0.000000e+00> : vector<8x384xf32>
    %23 = tpu.matmul %22, %21, %cst_9 {dimension_numbers = #tpu.dot_dimension_numbers<[1], [0], [0], [1], [0, 0, 1, 1], [], []>} : vector<8x128xbf16>, vector<128x384xbf16>, vector<8x384xf32> -> vector<8x384xf32>
    %c0_10 = arith.constant 0 : index
    %c0_11 = arith.constant 0 : index
    %c0_12 = arith.constant 0 : index
    %24 = vector.load %arg4[%c0_10, %c0_11, %c0_12] : memref<1x1x384xf32, #tpu.memory_space<vmem>>, vector<1x1x384xf32>
    %25 = vector.shape_cast %24 : vector<1x1x384xf32> to vector<1x384xf32>
    %26 = vector.broadcast %25 : vector<1x384xf32> to vector<8x384xf32>
    %27 = arith.addf %23, %26 : vector<8x384xf32>
    %28 = tpu.iota {dimensions = array<i32: 1>} : vector<8x8xi32>
    %c7_i32 = arith.constant 7 : i32
    %29 = vector.broadcast %c7_i32 : i32 to vector<8x8xi32>
    %30 = arith.cmpi slt, %28, %29 : vector<8x8xi32>
    %31 = vector.extract_strided_slice %27 {offsets = [0, 0], sizes = [8, 64], strides = [1, 1]} : vector<8x384xf32> to vector<8x64xf32>
    %32 = vector.extract_strided_slice %27 {offsets = [0, 128], sizes = [8, 64], strides = [1, 1]} : vector<8x384xf32> to vector<8x64xf32>
    %33 = vector.extract_strided_slice %27 {offsets = [0, 256], sizes = [8, 64], strides = [1, 1]} : vector<8x384xf32> to vector<8x64xf32>
    %34 = arith.truncf %31 : vector<8x64xf32> to vector<8x64xbf16>
    %35 = arith.truncf %32 : vector<8x64xf32> to vector<8x64xbf16>
    %cst_13 = arith.constant dense<0.000000e+00> : vector<8x8xf32>
    %36 = tpu.matmul %34, %35, %cst_13 {dimension_numbers = #tpu.dot_dimension_numbers<[1], [1], [0], [0], [0, 0, 1, 0], [], []>} : vector<8x64xbf16>, vector<8x64xbf16>, vector<8x8xf32> -> vector<8x8xf32>
    %cst_14 = arith.constant 1.250000e-01 : f32
    %37 = vector.broadcast %cst_14 : f32 to vector<8x8xf32>
    %38 = arith.mulf %36, %37 : vector<8x8xf32>
    %cst_15 = arith.constant -1.000000e+30 : f32
    %39 = vector.broadcast %cst_15 : f32 to vector<8x8xf32>
    %40 = arith.select %30, %38, %39 : vector<8x8xi1>, vector<8x8xf32>
    %cst_16 = arith.constant dense<0xFF800000> : vector<8xf32>
    %41 = vector.multi_reduction <maximumf>, %40, %cst_16 [1] : vector<8x8xf32> to vector<8xf32>
    %42 = vector.shape_cast %41 : vector<8xf32> to vector<8x1xf32>
    %43 = vector.broadcast %42 : vector<8x1xf32> to vector<8x8xf32>
    %44 = arith.subf %40, %43 : vector<8x8xf32>
    %45 = math.exp %44 : vector<8x8xf32>
    %cst_17 = arith.constant dense<0.000000e+00> : vector<8xf32>
    %46 = vector.multi_reduction <add>, %45, %cst_17 [1] : vector<8x8xf32> to vector<8xf32>
    %47 = vector.shape_cast %46 : vector<8xf32> to vector<8x1xf32>
    %48 = vector.broadcast %47 : vector<8x1xf32> to vector<8x8xf32>
    %49 = arith.divf %45, %48 : vector<8x8xf32>
    %50 = arith.truncf %49 : vector<8x8xf32> to vector<8x8xbf16>
    %51 = arith.truncf %33 : vector<8x64xf32> to vector<8x64xbf16>
    %cst_18 = arith.constant dense<0.000000e+00> : vector<8x64xf32>
    %52 = tpu.matmul %50, %51, %cst_18 {dimension_numbers = #tpu.dot_dimension_numbers<[1], [0], [0], [1], [0, 0, 1, 1], [], []>} : vector<8x8xbf16>, vector<8x64xbf16>, vector<8x64xf32> -> vector<8x64xf32>
    %c0_19 = arith.constant 0 : index
    %c0_20 = arith.constant 0 : index
    %53 = vector.load %arg12[%c0_19, %c0_20] : memref<8x128xf32, #tpu.memory_space<vmem>>, vector<8x64xf32>
    tpu.vector_store %arg12[%c0_19, %c0_20], %52 {strides = array<i32>} : memref<8x128xf32, #tpu.memory_space<vmem>>, vector<8x64xf32>,
    %54 = vector.extract_strided_slice %27 {offsets = [0, 64], sizes = [8, 64], strides = [1, 1]} : vector<8x384xf32> to vector<8x64xf32>
    %55 = vector.extract_strided_slice %27 {offsets = [0, 192], sizes = [8, 64], strides = [1, 1]} : vector<8x384xf32> to vector<8x64xf32>
    %56 = vector.extract_strided_slice %27 {offsets = [0, 320], sizes = [8, 64], strides = [1, 1]} : vector<8x384xf32> to vector<8x64xf32>
    %57 = arith.truncf %54 : vector<8x64xf32> to vector<8x64xbf16>
    %58 = arith.truncf %55 : vector<8x64xf32> to vector<8x64xbf16>
    %cst_21 = arith.constant dense<0.000000e+00> : vector<8x8xf32>
    %59 = tpu.matmul %57, %58, %cst_21 {dimension_numbers = #tpu.dot_dimension_numbers<[1], [1], [0], [0], [0, 0, 1, 0], [], []>} : vector<8x64xbf16>, vector<8x64xbf16>, vector<8x8xf32> -> vector<8x8xf32>
    %cst_22 = arith.constant 1.250000e-01 : f32
    %60 = vector.broadcast %cst_22 : f32 to vector<8x8xf32>
    %61 = arith.mulf %59, %60 : vector<8x8xf32>
    %cst_23 = arith.constant -1.000000e+30 : f32
    %62 = vector.broadcast %cst_23 : f32 to vector<8x8xf32>
    %63 = arith.select %30, %61, %62 : vector<8x8xi1>, vector<8x8xf32>
    %cst_24 = arith.constant dense<0xFF800000> : vector<8xf32>
    %64 = vector.multi_reduction <maximumf>, %63, %cst_24 [1] : vector<8x8xf32> to vector<8xf32>
    %65 = vector.shape_cast %64 : vector<8xf32> to vector<8x1xf32>
    %66 = vector.broadcast %65 : vector<8x1xf32> to vector<8x8xf32>
    %67 = arith.subf %63, %66 : vector<8x8xf32>
    %68 = math.exp %67 : vector<8x8xf32>
    %cst_25 = arith.constant dense<0.000000e+00> : vector<8xf32>
    %69 = vector.multi_reduction <add>, %68, %cst_25 [1] : vector<8x8xf32> to vector<8xf32>
    %70 = vector.shape_cast %69 : vector<8xf32> to vector<8x1xf32>
    %71 = vector.broadcast %70 : vector<8x1xf32> to vector<8x8xf32>
    %72 = arith.divf %68, %71 : vector<8x8xf32>
    %73 = arith.truncf %72 : vector<8x8xf32> to vector<8x8xbf16>
    %74 = arith.truncf %56 : vector<8x64xf32> to vector<8x64xbf16>
    %cst_26 = arith.constant dense<0.000000e+00> : vector<8x64xf32>
    %75 = tpu.matmul %73, %74, %cst_26 {dimension_numbers = #tpu.dot_dimension_numbers<[1], [0], [0], [1], [0, 0, 1, 1], [], []>} : vector<8x8xbf16>, vector<8x64xbf16>, vector<8x64xf32> -> vector<8x64xf32>
    %c0_27 = arith.constant 0 : index
    %c64 = arith.constant 64 : index
    %76 = vector.load %arg12[%c0_27, %c64] : memref<8x128xf32, #tpu.memory_space<vmem>>, vector<8x64xf32>
    tpu.vector_store %arg12[%c0_27, %c64], %75 {strides = array<i32>} : memref<8x128xf32, #tpu.memory_space<vmem>>, vector<8x64xf32>,
    %c0_28 = arith.constant 0 : index
    %c0_29 = arith.constant 0 : index
    %77 = vector.load %arg12[%c0_28, %c0_29] : memref<8x128xf32, #tpu.memory_space<vmem>>, vector<8x128xf32>
    %c0_30 = arith.constant 0 : index
    %c0_31 = arith.constant 0 : index
    %c0_32 = arith.constant 0 : index
    %78 = vector.load %arg5[%c0_30, %c0_31, %c0_32] : memref<1x128x128xbf16, #tpu.memory_space<vmem>>, vector<1x128x128xbf16>
    %79 = vector.shape_cast %78 : vector<1x128x128xbf16> to vector<128x128xbf16>
    %80 = arith.truncf %77 : vector<8x128xf32> to vector<8x128xbf16>
    %cst_33 = arith.constant dense<0.000000e+00> : vector<8x128xf32>
    %81 = tpu.matmul %80, %79, %cst_33 {dimension_numbers = #tpu.dot_dimension_numbers<[1], [0], [0], [1], [0, 0, 1, 1], [], []>} : vector<8x128xbf16>, vector<128x128xbf16>, vector<8x128xf32> -> vector<8x128xf32>
    %c0_34 = arith.constant 0 : index
    %c0_35 = arith.constant 0 : index
    %c0_36 = arith.constant 0 : index
    %82 = vector.load %arg6[%c0_34, %c0_35, %c0_36] : memref<1x1x128xf32, #tpu.memory_space<vmem>>, vector<1x1x128xf32>
    %83 = vector.shape_cast %82 : vector<1x1x128xf32> to vector<1x128xf32>
    %84 = vector.broadcast %83 : vector<1x128xf32> to vector<8x128xf32>
    %85 = arith.addf %81, %84 : vector<8x128xf32>
    %86 = arith.addf %85, %3 : vector<8x128xf32>
    %cst_37 = arith.constant dense<0.000000e+00> : vector<8xf32>
    %87 = vector.multi_reduction <add>, %86, %cst_37 [1] : vector<8x128xf32> to vector<8xf32>
    %88 = vector.shape_cast %87 : vector<8xf32> to vector<8x1xf32>
    %cst_38 = arith.constant 1.280000e+02 : f32
    %89 = vector.broadcast %cst_38 : f32 to vector<8x1xf32>
    %90 = arith.divf %88, %89 : vector<8x1xf32>
    %91 = vector.broadcast %90 : vector<8x1xf32> to vector<8x128xf32>
    %92 = arith.subf %86, %91 : vector<8x128xf32>
    %93 = arith.mulf %92, %92 : vector<8x128xf32>
    %cst_39 = arith.constant dense<0.000000e+00> : vector<8xf32>
    %94 = vector.multi_reduction <add>, %93, %cst_39 [1] : vector<8x128xf32> to vector<8xf32>
    %95 = vector.shape_cast %94 : vector<8xf32> to vector<8x1xf32>
    %cst_40 = arith.constant 1.280000e+02 : f32
    %96 = vector.broadcast %cst_40 : f32 to vector<8x1xf32>
    %97 = arith.divf %95, %96 : vector<8x1xf32>
    %cst_41 = arith.constant 9.99999974E-6 : f32
    %98 = vector.broadcast %cst_41 : f32 to vector<8x1xf32>
    %99 = arith.addf %97, %98 : vector<8x1xf32>
    %100 = math.rsqrt %99 : vector<8x1xf32>
    %101 = vector.broadcast %100 : vector<8x1xf32> to vector<8x128xf32>
    %102 = arith.mulf %92, %101 : vector<8x128xf32>
    %c0_42 = arith.constant 0 : index
    %c0_43 = arith.constant 0 : index
    %c0_44 = arith.constant 0 : index
    %103 = vector.load %arg7[%c0_42, %c0_43, %c0_44] : memref<1x128x256xbf16, #tpu.memory_space<vmem>>, vector<1x128x256xbf16>
    %104 = vector.shape_cast %103 : vector<1x128x256xbf16> to vector<128x256xbf16>
    %105 = arith.truncf %102 : vector<8x128xf32> to vector<8x128xbf16>
    %cst_45 = arith.constant dense<0.000000e+00> : vector<8x256xf32>
    %106 = tpu.matmul %105, %104, %cst_45 {dimension_numbers = #tpu.dot_dimension_numbers<[1], [0], [0], [1], [0, 0, 1, 1], [], []>} : vector<8x128xbf16>, vector<128x256xbf16>, vector<8x256xf32> -> vector<8x256xf32>
    %c0_46 = arith.constant 0 : index
    %c0_47 = arith.constant 0 : index
    %c0_48 = arith.constant 0 : index
    %107 = vector.load %arg8[%c0_46, %c0_47, %c0_48] : memref<1x1x256xf32, #tpu.memory_space<vmem>>, vector<1x1x256xf32>
    %108 = vector.shape_cast %107 : vector<1x1x256xf32> to vector<1x256xf32>
    %109 = vector.broadcast %108 : vector<1x256xf32> to vector<8x256xf32>
    %110 = arith.addf %106, %109 : vector<8x256xf32>
    %cst_49 = arith.constant 5.000000e-01 : f32
    %111 = vector.broadcast %cst_49 : f32 to vector<8x256xf32>
    %112 = arith.mulf %111, %110 : vector<8x256xf32>
    %cst_50 = arith.constant 4.471500e-02 : f32
    %113 = vector.broadcast %cst_50 : f32 to vector<8x256xf32>
    %114 = arith.mulf %113, %110 : vector<8x256xf32>
    %115 = arith.mulf %114, %110 : vector<8x256xf32>
    %116 = arith.mulf %115, %110 : vector<8x256xf32>
    %117 = arith.addf %110, %116 : vector<8x256xf32>
    %cst_51 = arith.constant 0.797884583 : f32
    %118 = vector.broadcast %cst_51 : f32 to vector<8x256xf32>
    %119 = arith.mulf %118, %117 : vector<8x256xf32>
    %120 = math.tanh %119 : vector<8x256xf32>
    %cst_52 = arith.constant 1.000000e+00 : f32
    %121 = vector.broadcast %cst_52 : f32 to vector<8x256xf32>
    %122 = arith.addf %121, %120 : vector<8x256xf32>
    %123 = arith.mulf %112, %122 : vector<8x256xf32>
    %c0_53 = arith.constant 0 : index
    %c0_54 = arith.constant 0 : index
    %c0_55 = arith.constant 0 : index
    %124 = vector.load %arg9[%c0_53, %c0_54, %c0_55] : memref<1x256x128xbf16, #tpu.memory_space<vmem>>, vector<1x256x128xbf16>
    %125 = vector.shape_cast %124 : vector<1x256x128xbf16> to vector<256x128xbf16>
    %126 = arith.truncf %123 : vector<8x256xf32> to vector<8x256xbf16>
    %cst_56 = arith.constant dense<0.000000e+00> : vector<8x128xf32>
    %127 = tpu.matmul %126, %125, %cst_56 {dimension_numbers = #tpu.dot_dimension_numbers<[1], [0], [0], [1], [0, 0, 1, 1], [], []>} : vector<8x256xbf16>, vector<256x128xbf16>, vector<8x128xf32> -> vector<8x128xf32>
    %c0_57 = arith.constant 0 : index
    %c0_58 = arith.constant 0 : index
    %c0_59 = arith.constant 0 : index
    %128 = vector.load %arg10[%c0_57, %c0_58, %c0_59] : memref<1x1x128xf32, #tpu.memory_space<vmem>>, vector<1x1x128xf32>
    %129 = vector.shape_cast %128 : vector<1x1x128xf32> to vector<1x128xf32>
    %130 = vector.broadcast %129 : vector<1x128xf32> to vector<8x128xf32>
    %131 = arith.addf %127, %130 : vector<8x128xf32>
    %132 = arith.addf %131, %86 : vector<8x128xf32>
    %c0_60 = arith.constant 0 : index
    %c0_61 = arith.constant 0 : index
    %133 = vector.load %arg11[%c0_60, %c0_61] : memref<8x128xf32, #tpu.memory_space<vmem>>, vector<8x128xf32>
    tpu.vector_store %arg11[%c0_60, %c0_61], %132 {strides = array<i32>} : memref<8x128xf32, #tpu.memory_space<vmem>>, vector<8x128xf32>,
    return
  }
  func.func @transform_0(%arg0: i32, %arg1: i32) -> (i32, i32) {
    %c0_i32 = arith.constant 0 : i32
    %c0_i32_0 = arith.constant 0 : i32
    return %arg0, %c0_i32 : i32, i32
  }
  func.func @transform_1(%arg0: i32, %arg1: i32) -> (i32, i32, i32) {
    %c0_i32 = arith.constant 0 : i32
    %c0_i32_0 = arith.constant 0 : i32
    %c0_i32_1 = arith.constant 0 : i32
    return %arg1, %c0_i32, %c0_i32_0 : i32, i32, i32
  }
  func.func @transform_2(%arg0: i32, %arg1: i32) -> (i32, i32, i32) {
    %c0_i32 = arith.constant 0 : i32
    %c0_i32_0 = arith.constant 0 : i32
    %c0_i32_1 = arith.constant 0 : i32
    return %arg1, %c0_i32, %c0_i32_0 : i32, i32, i32
  }
  func.func @transform_3(%arg0: i32, %arg1: i32) -> (i32, i32, i32) {
    %c0_i32 = arith.constant 0 : i32
    %c0_i32_0 = arith.constant 0 : i32
    %c0_i32_1 = arith.constant 0 : i32
    return %arg1, %c0_i32, %c0_i32_0 : i32, i32, i32
  }
  func.func @transform_4(%arg0: i32, %arg1: i32) -> (i32, i32, i32) {
    %c0_i32 = arith.constant 0 : i32
    %c0_i32_0 = arith.constant 0 : i32
    %c0_i32_1 = arith.constant 0 : i32
    return %arg1, %c0_i32, %c0_i32_0 : i32, i32, i32
  }
  func.func @transform_5(%arg0: i32, %arg1: i32) -> (i32, i32, i32) {
    %c0_i32 = arith.constant 0 : i32
    %c0_i32_0 = arith.constant 0 : i32
    %c0_i32_1 = arith.constant 0 : i32
    return %arg1, %c0_i32, %c0_i32_0 : i32, i32, i32
  }
  func.func @transform_6(%arg0: i32, %arg1: i32) -> (i32, i32, i32) {
    %c0_i32 = arith.constant 0 : i32
    %c0_i32_0 = arith.constant 0 : i32
    %c0_i32_1 = arith.constant 0 : i32
    return %arg1, %c0_i32, %c0_i32_0 : i32, i32, i32
  }
  func.func @transform_7(%arg0: i32, %arg1: i32) -> (i32, i32, i32) {
    %c0_i32 = arith.constant 0 : i32
    %c0_i32_0 = arith.constant 0 : i32
    %c0_i32_1 = arith.constant 0 : i32
    return %arg1, %c0_i32, %c0_i32_0 : i32, i32, i32
  }
  func.func @transform_8(%arg0: i32, %arg1: i32) -> (i32, i32, i32) {
    %c0_i32 = arith.constant 0 : i32
    %c0_i32_0 = arith.constant 0 : i32
    %c0_i32_1 = arith.constant 0 : i32
    return %arg1, %c0_i32, %c0_i32_0 : i32, i32, i32
  }
  func.func @transform_9(%arg0: i32, %arg1: i32) -> (i32, i32) {
    %c0_i32 = arith.constant 0 : i32
    %c0_i32_0 = arith.constant 0 : i32
    return %arg0, %c0_i32 : i32, i32
  }
}

</mosaic_0001>

<llo_original>
// kernel: sit_forward.1
$region0: #{sit_forward.1}
  #allocation0 [shape = 'u32[]', space=smem, size = 0x4, offset = 0x4, fixed_abs, tag = 'smem constant byte address 0x4 - core index']
  #allocation1 [shape = 'u32[144,128]{1,0:T(1,128)}', space=vmem, size = 0x12000, scoped, tag = 'internal scratch']
  #allocation2 [shape = 'f32[8,128]{1,0:T(8,128)}', space=vmem, size = 0x1000, scoped, tag = 'scratch operand']
  %s0 = inlined_call_operand.vmem [shape: f32[16,128], index: 0, kind: input, shape index: {}]
  %s1 = inlined_call_operand.vmem [shape: bf16[2,128,384], index: 1, kind: input, shape index: {}]
  %s2 = inlined_call_operand.vmem [shape: f32[2,1,384], index: 2, kind: input, shape index: {}]
  %s3 = inlined_call_operand.vmem [shape: bf16[2,128,128], index: 3, kind: input, shape index: {}]
  %s4 = inlined_call_operand.vmem [shape: f32[2,1,128], index: 4, kind: input, shape index: {}]
  %s5 = inlined_call_operand.vmem [shape: bf16[2,128,256], index: 5, kind: input, shape index: {}]
  %s6 = inlined_call_operand.vmem [shape: f32[2,1,256], index: 6, kind: input, shape index: {}]
  %s7 = inlined_call_operand.vmem [shape: bf16[2,256,128], index: 7, kind: input, shape index: {}]
  %s8 = inlined_call_operand.vmem [shape: f32[2,1,128], index: 8, kind: input, shape index: {}]
  %s9 = inlined_call_operand.vmem [shape: f32[16,128], index: 9, kind: output, shape index: {}]
  %s10 = sld [smem:[#allocation0]]
  $region73: #{sit_forward.1} parent=0
    _
  %s12 = ssub.s32 1, %s10
  %s13 = scalar_select 0, %s12, %s10
  loop: start=0, step=1, limit=6
  $region2: #{sit_forward.1} parent=0 // loop_pre_header
    _
  $region3: #{sit_forward.1} parent=0 // loop_header
    %s15 = sphi 0, %s19
    %p16 = scmp.ge.s32.totalorder %s15, 6
    %s22 = sphi 0, %s34
    %s23 = sphi 0, %s30
    %s24 = sphi 0, %s22
    %s25 = sphi 0, %s23
    %s26 = sphi 0, %s24
    %s27 = sphi 0, %s25
    %s37 = sphi 0, %s39
    %s40 = sphi 0, %s37
    %s41 = sphi 0, %s40
    %s57 = sphi 0, %s41
    %s63 = sphi 0, %s65
    %s66 = sphi 0, %s63
    %s67 = sphi 0, %s66
    %s83 = sphi 0, %s67
    %s89 = sphi 0, %s91
    %s92 = sphi 0, %s89
    %s93 = sphi 0, %s92
    %s109 = sphi 0, %s93
    %s115 = sphi 0, %s117
    %s118 = sphi 0, %s115
    %s119 = sphi 0, %s118
    %s135 = sphi 0, %s119
    %s141 = sphi 0, %s143
    %s144 = sphi 0, %s141
    %s145 = sphi 0, %s144
    %s161 = sphi 0, %s145
    %s167 = sphi 0, %s169
    %s170 = sphi 0, %s167
    %s171 = sphi 0, %s170
    %s187 = sphi 0, %s171
    %s193 = sphi 0, %s195
    %s196 = sphi 0, %s193
    %s197 = sphi 0, %s196
    %s213 = sphi 0, %s197
    %s219 = sphi 0, %s221
    %s222 = sphi 0, %s219
    %s223 = sphi 0, %s222
    %s239 = sphi 0, %s223
    %s245 = sphi 0, %s247
    %s248 = sphi 0, %s245
    %s249 = sphi 0, %s248
    %s265 = sphi 0, %s249
    %s271 = sphi 0, %s273
    %s274 = sphi 0, %s271
    %s275 = sphi 0, %s274
    %s291 = sphi 0, %s275
  $region4: #{sit_forward.1} parent=0 // loop_header_branch
    %18 = sbr.rel (%p16) target = $region8
  $region5: #{sit_forward.1} parent=0 // loop_body
    %s20 = ssub.s32 %s15, 1
    %s21 = ssub.s32 %s15, 2
    %s28 = sadd.s32 1, %s23
    %p29 = scmp.ge.s32.totalorder %s28, 2
    %s30 = scalar_select %p29, 0, %s28
    %s31 = sadd.s32 1, %s22
    %s32 = scalar_select %p29, %s31, %s22
    %p33 = scmp.ge.s32.totalorder %s32, 2
    %s34 = scalar_select %p33, 0, %s32
    %s35 = ssub.s32 %s22, %s34
    %p36 = scmp.eq.s32.totalorder %s35, 0
    %s38 = sadd.s32 %s37, 1
    %s39 = scalar_select %p36, %s37, %s38
    %p42 = pneg %p36
    %p43 = scmp.eq.s32.totalorder %s15, 3
    %p44 = por %p42, %p43
    %p45 = scmp.ne.s32.totalorder %s37, %s40
    %p46 = scmp.eq.s32.totalorder %s15, 0
    %p47 = por %p45, %p46
    %p48 = scmp.ne.s32.totalorder %s37, %s40
    %p49 = scmp.eq.s32.totalorder %s20, 3
    %p50 = por %p48, %p49
    %p51 = scmp.ne.s32.totalorder %s40, %s41
    %p52 = scmp.eq.s32.totalorder %s20, 0
    %p53 = por %p51, %p52
    %p54 = scmp.ne.s32.totalorder %s40, %s41
    %p55 = scmp.eq.s32.totalorder %s21, 3
    %p56 = por %p54, %p55
    %p58 = scmp.ne.s32.totalorder %s41, %s57
    %p59 = scmp.eq.s32.totalorder %s21, 0
    %p60 = por %p58, %p59
    %s61 = ssub.s32 %s23, %s30
    %p62 = scmp.eq.s32.totalorder %s61, 0
    %s64 = sadd.s32 %s63, 1
    %s65 = scalar_select %p62, %s63, %s64
    %p68 = pneg %p62
    %p69 = scmp.eq.s32.totalorder %s15, 3
    %p70 = por %p68, %p69
    %p71 = scmp.ne.s32.totalorder %s63, %s66
    %p72 = scmp.eq.s32.totalorder %s15, 0
    %p73 = por %p71, %p72
    %p74 = scmp.ne.s32.totalorder %s63, %s66
    %p75 = scmp.eq.s32.totalorder %s20, 3
    %p76 = por %p74, %p75
    %p77 = scmp.ne.s32.totalorder %s66, %s67
    %p78 = scmp.eq.s32.totalorder %s20, 0
    %p79 = por %p77, %p78
    %p80 = scmp.ne.s32.totalorder %s66, %s67
    %p81 = scmp.eq.s32.totalorder %s21, 3
    %p82 = por %p80, %p81
    %p84 = scmp.ne.s32.totalorder %s67, %s83
    %p85 = scmp.eq.s32.totalorder %s21, 0
    %p86 = por %p84, %p85
    %s87 = ssub.s32 %s23, %s30
    %p88 = scmp.eq.s32.totalorder %s87, 0
    %s90 = sadd.s32 %s89, 1
    %s91 = scalar_select %p88, %s89, %s90
    %p94 = pneg %p88
    %p95 = scmp.eq.s32.totalorder %s15, 3
    %p96 = por %p94, %p95
    %p97 = scmp.ne.s32.totalorder %s89, %s92
    %p98 = scmp.eq.s32.totalorder %s15, 0
    %p99 = por %p97, %p98
    %p100 = scmp.ne.s32.totalorder %s89, %s92
    %p101 = scmp.eq.s32.totalorder %s20, 3
    %p102 = por %p100, %p101
    %p103 = scmp.ne.s32.totalorder %s92, %s93
    %p104 = scmp.eq.s32.totalorder %s20, 0
    %p105 = por %p103, %p104
    %p106 = scmp.ne.s32.totalorder %s92, %s93
    %p107 = scmp.eq.s32.totalorder %s21, 3
    %p108 = por %p106, %p107
    %p110 = scmp.ne.s32.totalorder %s93, %s109
    %p111 = scmp.eq.s32.totalorder %s21, 0
    %p112 = por %p110, %p111
    %s113 = ssub.s32 %s23, %s30
    %p114 = scmp.eq.s32.totalorder %s113, 0
    %s116 = sadd.s32 %s115, 1
    %s117 = scalar_select %p114, %s115, %s116
    %p120 = pneg %p114
    %p121 = scmp.eq.s32.totalorder %s15, 3
    %p122 = por %p120, %p121
    %p123 = scmp.ne.s32.totalorder %s115, %s118
    %p124 = scmp.eq.s32.totalorder %s15, 0
    %p125 = por %p123, %p124
    %p126 = scmp.ne.s32.totalorder %s115, %s118
    %p127 = scmp.eq.s32.totalorder %s20, 3
    %p128 = por %p126, %p127
    %p129 = scmp.ne.s32.totalorder %s118, %s119
    %p130 = scmp.eq.s32.totalorder %s20, 0
    %p131 = por %p129, %p130
    %p132 = scmp.ne.s32.totalorder %s118, %s119
    %p133 = scmp.eq.s32.totalorder %s21, 3
    %p134 = por %p132, %p133
    %p136 = scmp.ne.s32.totalorder %s119, %s135
    %p137 = scmp.eq.s32.totalorder %s21, 0
    %p138 = por %p136, %p137
    %s139 = ssub.s32 %s23, %s30
    %p140 = scmp.eq.s32.totalorder %s139, 0
    %s142 = sadd.s32 %s141, 1
    %s143 = scalar_select %p140, %s141, %s142
    %p146 = pneg %p140
    %p147 = scmp.eq.s32.totalorder %s15, 3
    %p148 = por %p146, %p147
    %p149 = scmp.ne.s32.totalorder %s141, %s144
    %p150 = scmp.eq.s32.totalorder %s15, 0
    %p151 = por %p149, %p150
    %p152 = scmp.ne.s32.totalorder %s141, %s144
    %p153 = scmp.eq.s32.totalorder %s20, 3
    %p154 = por %p152, %p153
    %p155 = scmp.ne.s32.totalorder %s144, %s145
    %p156 = scmp.eq.s32.totalorder %s20, 0
    %p157 = por %p155, %p156
    %p158 = scmp.ne.s32.totalorder %s144, %s145
    %p159 = scmp.eq.s32.totalorder %s21, 3
    %p160 = por %p158, %p159
    %p162 = scmp.ne.s32.totalorder %s145, %s161
    %p163 = scmp.eq.s32.totalorder %s21, 0
    %p164 = por %p162, %p163
    %s165 = ssub.s32 %s23, %s30
    %p166 = scmp.eq.s32.totalorder %s165, 0
    %s168 = sadd.s32 %s167, 1
    %s169 = scalar_select %p166, %s167, %s168
    %p172 = pneg %p166
    %p173 = scmp.eq.s32.totalorder %s15, 3
    %p174 = por %p172, %p173
    %p175 = scmp.ne.s32.totalorder %s167, %s170
    %p176 = scmp.eq.s32.totalorder %s15, 0
    %p177 = por %p175, %p176
    %p178 = scmp.ne.s32.totalorder %s167, %s170
    %p179 = scmp.eq.s32.totalorder %s20, 3
    %p180 = por %p178, %p179
    %p181 = scmp.ne.s32.totalorder %s170, %s171
    %p182 = scmp.eq.s32.totalorder %s20, 0
    %p183 = por %p181, %p182
    %p184 = scmp.ne.s32.totalorder %s170, %s171
    %p185 = scmp.eq.s32.totalorder %s21, 3
    %p186 = por %p184, %p185
    %p188 = scmp.ne.s32.totalorder %s171, %s187
    %p189 = scmp.eq.s32.totalorder %s21, 0
    %p190 = por %p188, %p189
    %s191 = ssub.s32 %s23, %s30
    %p192 = scmp.eq.s32.totalorder %s191, 0
    %s194 = sadd.s32 %s193, 1
    %s195 = scalar_select %p192, %s193, %s194
    %p198 = pneg %p192
    %p199 = scmp.eq.s32.totalorder %s15, 3
    %p200 = por %p198, %p199
    %p201 = scmp.ne.s32.totalorder %s193, %s196
    %p202 = scmp.eq.s32.totalorder %s15, 0
    %p203 = por %p201, %p202
    %p204 = scmp.ne.s32.totalorder %s193, %s196
    %p205 = scmp.eq.s32.totalorder %s20, 3
    %p206 = por %p204, %p205
    %p207 = scmp.ne.s32.totalorder %s196, %s197
    %p208 = scmp.eq.s32.totalorder %s20, 0
    %p209 = por %p207, %p208
    %p210 = scmp.ne.s32.totalorder %s196, %s197
    %p211 = scmp.eq.s32.totalorder %s21, 3
    %p212 = por %p210, %p211
    %p214 = scmp.ne.s32.totalorder %s197, %s213
    %p215 = scmp.eq.s32.totalorder %s21, 0
    %p216 = por %p214, %p215
    %s217 = ssub.s32 %s23, %s30
    %p218 = scmp.eq.s32.totalorder %s217, 0
    %s220 = sadd.s32 %s219, 1
    %s221 = scalar_select %p218, %s219, %s220
    %p224 = pneg %p218
    %p225 = scmp.eq.s32.totalorder %s15, 3
    %p226 = por %p224, %p225
    %p227 = scmp.ne.s32.totalorder %s219, %s222
    %p228 = scmp.eq.s32.totalorder %s15, 0
    %p229 = por %p227, %p228
    %p230 = scmp.ne.s32.totalorder %s219, %s222
    %p231 = scmp.eq.s32.totalorder %s20, 3
    %p232 = por %p230, %p231
    %p233 = scmp.ne.s32.totalorder %s222, %s223
    %p234 = scmp.eq.s32.totalorder %s20, 0
    %p235 = por %p233, %p234
    %p236 = scmp.ne.s32.totalorder %s222, %s223
    %p237 = scmp.eq.s32.totalorder %s21, 3
    %p238 = por %p236, %p237
    %p240 = scmp.ne.s32.totalorder %s223, %s239
    %p241 = scmp.eq.s32.totalorder %s21, 0
    %p242 = por %p240, %p241
    %s243 = ssub.s32 %s23, %s30
    %p244 = scmp.eq.s32.totalorder %s243, 0
    %s246 = sadd.s32 %s245, 1
    %s247 = scalar_select %p244, %s245, %s246
    %p250 = pneg %p244
    %p251 = scmp.eq.s32.totalorder %s15, 3
    %p252 = por %p250, %p251
    %p253 = scmp.ne.s32.totalorder %s245, %s248
    %p254 = scmp.eq.s32.totalorder %s15, 0
    %p255 = por %p253, %p254
    %p256 = scmp.ne.s32.totalorder %s245, %s248
    %p257 = scmp.eq.s32.totalorder %s20, 3
    %p258 = por %p256, %p257
    %p259 = scmp.ne.s32.totalorder %s248, %s249
    %p260 = scmp.eq.s32.totalorder %s20, 0
    %p261 = por %p259, %p260
    %p262 = scmp.ne.s32.totalorder %s248, %s249
    %p263 = scmp.eq.s32.totalorder %s21, 3
    %p264 = por %p262, %p263
    %p266 = scmp.ne.s32.totalorder %s249, %s265
    %p267 = scmp.eq.s32.totalorder %s21, 0
    %p268 = por %p266, %p267
    %s269 = ssub.s32 %s22, %s34
    %p270 = scmp.eq.s32.totalorder %s269, 0
    %s272 = sadd.s32 %s271, 1
    %s273 = scalar_select %p270, %s271, %s272
    %p276 = pneg %p270
    %p277 = scmp.eq.s32.totalorder %s15, 3
    %p278 = por %p276, %p277
    %p279 = scmp.ne.s32.totalorder %s271, %s274
    %p280 = scmp.eq.s32.totalorder %s15, 0
    %p281 = por %p279, %p280
    %p282 = scmp.ne.s32.totalorder %s271, %s274
    %p283 = scmp.eq.s32.totalorder %s20, 3
    %p284 = por %p282, %p283
    %p285 = scmp.ne.s32.totalorder %s274, %s275
    %p286 = scmp.eq.s32.totalorder %s20, 0
    %p287 = por %p285, %p286
    %p288 = scmp.ne.s32.totalorder %s274, %s275
    %p289 = scmp.eq.s32.totalorder %s21, 3
    %p290 = por %p288, %p289
    %p292 = scmp.ne.s32.totalorder %s275, %s291
    %p293 = scmp.eq.s32.totalorder %s21, 0
    %p294 = por %p292, %p293
    %p295 = scmp.le.s32.totalorder 1, %s15
    %p296 = scmp.lt.s32.totalorder %s15, 5
    %p297 = pnand %p295, %p296
    %p298 = pneg %p297
    // Predicated region
    $region9: #{sit_forward.1} parent=5 // pred_check
      _
    $region10: #{sit_forward.1} parent=5 // pred_check_branch
      %300 = sbr.rel (%p297) target = $region12
    $region11: #{sit_forward.1} parent=5 // pred_region
      %s301 = ssub.s32 %s15, 1
    $region12: #{sit_forward.1} parent=5 // pred_fallthru
      _
    %p302 = scmp.lt.s32.totalorder %s15, 4
    // Predicated region
    $region13: #{sit_forward.1} parent=5 // pred_check
      %p303 = pneg %p302
    $region14: #{sit_forward.1} parent=5 // pred_check_branch
      %305 = sbr.rel (%p303) target = $region16
    $region15: #{sit_forward.1} parent=5 // pred_region
      // Predicated region
      $region17: #{sit_forward.1} parent=15 // pred_check
        %p306 = pneg %p47
      $region18: #{sit_forward.1} parent=15 // pred_check_branch
        %308 = sbr.rel (%p306) target = $region20
      $region19: #{sit_forward.1} parent=15 // pred_region
        %p309 = scmp.lt.s32.totalorder %s22, 1
        %s310 = scalar_select %p309, %s22, 1
        %s311 = smul.addr %s310, 8
        %s312 = scalar_lea.vmem %s0, %s311
      $region20: #{sit_forward.1} parent=15 // pred_fallthru
        _
      // Predicated region
      $region21: #{sit_forward.1} parent=15 // pred_check
        %p313 = pneg %p73
      $region22: #{sit_forward.1} parent=15 // pred_check_branch
        %315 = sbr.rel (%p313) target = $region24
      $region23: #{sit_forward.1} parent=15 // pred_region
        %p316 = scmp.lt.s32.totalorder %s23, 1
        %s317 = scalar_select %p316, %s23, 1
        %s318 = smul.addr %s317, 48
        %s319 = smul.addr %s318, 4
        %s320 = scalar_lea.vmem %s1, %s319
      $region24: #{sit_forward.1} parent=15 // pred_fallthru
        _
      // Predicated region
      $region25: #{sit_forward.1} parent=15 // pred_check
        %p321 = pneg %p99
      $region26: #{sit_forward.1} parent=15 // pred_check_branch
        %323 = sbr.rel (%p321) target = $region28
      $region27: #{sit_forward.1} parent=15 // pred_region
        %p324 = scmp.lt.s32.totalorder %s23, 1
        %s325 = scalar_select %p324, %s23, 1
        %s326 = smul.addr %s325, 3
        %s327 = scalar_lea.vmem %s2, %s326
      $region28: #{sit_forward.1} parent=15 // pred_fallthru
        _
      // Predicated region
      $region29: #{sit_forward.1} parent=15 // pred_check
        %p328 = pneg %p125
      $region30: #{sit_forward.1} parent=15 // pred_check_branch
        %330 = sbr.rel (%p328) target = $region32
      $region31: #{sit_forward.1} parent=15 // pred_region
        %p331 = scmp.lt.s32.totalorder %s23, 1
        %s332 = scalar_select %p331, %s23, 1
        %s333 = smul.addr %s332, 16
        %s334 = smul.addr %s333, 4
        %s335 = scalar_lea.vmem %s3, %s334
      $region32: #{sit_forward.1} parent=15 // pred_fallthru
        _
      // Predicated region
      $region33: #{sit_forward.1} parent=15 // pred_check
        %p336 = pneg %p151
      $region34: #{sit_forward.1} parent=15 // pred_check_branch
        %338 = sbr.rel (%p336) target = $region36
      $region35: #{sit_forward.1} parent=15 // pred_region
        %p339 = scmp.lt.s32.totalorder %s23, 1
        %s340 = scalar_select %p339, %s23, 1
        %s341 = scalar_lea.vmem %s4, %s340
      $region36: #{sit_forward.1} parent=15 // pred_fallthru
        _
      // Predicated region
      $region37: #{sit_forward.1} parent=15 // pred_check
        %p342 = pneg %p177
      $region38: #{sit_forward.1} parent=15 // pred_check_branch
        %344 = sbr.rel (%p342) target = $region40
      $region39: #{sit_forward.1} parent=15 // pred_region
        %p345 = scmp.lt.s32.totalorder %s23, 1
        %s346 = scalar_select %p345, %s23, 1
        %s347 = smul.addr %s346, 32
        %s348 = smul.addr %s347, 4
        %s349 = scalar_lea.vmem %s5, %s348
      $region40: #{sit_forward.1} parent=15 // pred_fallthru
        _
      // Predicated region
      $region41: #{sit_forward.1} parent=15 // pred_check
        %p350 = pneg %p203
      $region42: #{sit_forward.1} parent=15 // pred_check_branch
        %352 = sbr.rel (%p350) target = $region44
      $region43: #{sit_forward.1} parent=15 // pred_region
        %p353 = scmp.lt.s32.totalorder %s23, 1
        %s354 = scalar_select %p353, %s23, 1
        %s355 = smul.addr %s354, 2
        %s356 = scalar_lea.vmem %s6, %s355
      $region44: #{sit_forward.1} parent=15 // pred_fallthru
        _
      // Predicated region
      $region45: #{sit_forward.1} parent=15 // pred_check
        %p357 = pneg %p229
      $region46: #{sit_forward.1} parent=15 // pred_check_branch
        %359 = sbr.rel (%p357) target = $region48
      $region47: #{sit_forward.1} parent=15 // pred_region
        %p360 = scmp.lt.s32.totalorder %s23, 1
        %s361 = scalar_select %p360, %s23, 1
        %s362 = smul.addr %s361, 32
        %s363 = smul.addr %s362, 4
        %s364 = scalar_lea.vmem %s7, %s363
      $region48: #{sit_forward.1} parent=15 // pred_fallthru
        _
      // Predicated region
      $region49: #{sit_forward.1} parent=15 // pred_check
        %p365 = pneg %p255
      $region50: #{sit_forward.1} parent=15 // pred_check_branch
        %367 = sbr.rel (%p365) target = $region52
      $region51: #{sit_forward.1} parent=15 // pred_region
        %p368 = scmp.lt.s32.totalorder %s23, 1
        %s369 = scalar_select %p368, %s23, 1
        %s370 = scalar_lea.vmem %s8, %s369
      $region52: #{sit_forward.1} parent=15 // pred_fallthru
        _
    $region16: #{sit_forward.1} parent=5 // pred_fallthru
      _
    %p371 = scmp.le.s32.totalorder 1, %s15
    %p372 = scmp.lt.s32.totalorder %s15, 5
    %p373 = pnand %p371, %p372
    %p374 = pneg %p373
    // Predicated region
    $region53: #{sit_forward.1} parent=5 // pred_check
      _
    $region54: #{sit_forward.1} parent=5 // pred_check_branch
      %376 = sbr.rel (%p373) target = $region56
    $region55: #{sit_forward.1} parent=5 // pred_region
      %s377 = ssub.s32 %s15, 1
      %p378 = scmp.lt.s32.totalorder %s24, 1
      %s379 = scalar_select %p378, %s24, 1
      %s380 = smul.addr %s379, 8
      %s381 = scalar_lea.vmem %s0, %s380
      %p382 = pneg %p53
      %p383 = pneg %p50
      %p384 = scmp.lt.s32.totalorder %s25, 1
      %s385 = scalar_select %p384, %s25, 1
      %s386 = smul.addr %s385, 48
      %s387 = smul.addr %s386, 4
      %s388 = scalar_lea.vmem %s1, %s387
      %p389 = pneg %p79
      %p390 = pneg %p76
      %p391 = scmp.lt.s32.totalorder %s25, 1
      %s392 = scalar_select %p391, %s25, 1
      %s393 = smul.addr %s392, 3
      %s394 = scalar_lea.vmem %s2, %s393
      %p395 = pneg %p105
      %p396 = pneg %p102
      %p397 = scmp.lt.s32.totalorder %s25, 1
      %s398 = scalar_select %p397, %s25, 1
      %s399 = smul.addr %s398, 16
      %s400 = smul.addr %s399, 4
      %s401 = scalar_lea.vmem %s3, %s400
      %p402 = pneg %p131
      %p403 = pneg %p128
      %p404 = scmp.lt.s32.totalorder %s25, 1
      %s405 = scalar_select %p404, %s25, 1
      %s406 = scalar_lea.vmem %s4, %s405
      %p407 = pneg %p157
      %p408 = pneg %p154
      %p409 = scmp.lt.s32.totalorder %s25, 1
      %s410 = scalar_select %p409, %s25, 1
      %s411 = smul.addr %s410, 32
      %s412 = smul.addr %s411, 4
      %s413 = scalar_lea.vmem %s5, %s412
      %p414 = pneg %p183
      %p415 = pneg %p180
      %p416 = scmp.lt.s32.totalorder %s25, 1
      %s417 = scalar_select %p416, %s25, 1
      %s418 = smul.addr %s417, 2
      %s419 = scalar_lea.vmem %s6, %s418
      %p420 = pneg %p209
      %p421 = pneg %p206
      %p422 = scmp.lt.s32.totalorder %s25, 1
      %s423 = scalar_select %p422, %s25, 1
      %s424 = smul.addr %s423, 32
      %s425 = smul.addr %s424, 4
      %s426 = scalar_lea.vmem %s7, %s425
      %p427 = pneg %p235
      %p428 = pneg %p232
      %p429 = scmp.lt.s32.totalorder %s25, 1
      %s430 = scalar_select %p429, %s25, 1
      %s431 = scalar_lea.vmem %s8, %s430
      %p432 = pneg %p261
      %p433 = pneg %p258
      %p434 = pneg %p287
      %p435 = pneg %p284
      %p436 = scmp.lt.s32.totalorder %s24, 1
      %s437 = scalar_select %p436, %s24, 1
      %s438 = smul.addr %s437, 8
      %s439 = scalar_lea.vmem %s9, %s438
      %p440 = scmp.lt.s32.totalorder %s24, 1
      %s441 = scalar_select %p440, %s24, 1
      %s442 = smul.addr %s441, 8
      %s443 = scalar_lea.vmem %s0, %s442
      %p444 = scmp.lt.s32.totalorder %s25, 1
      %s445 = scalar_select %p444, %s25, 1
      %s446 = smul.addr %s445, 48
      %s447 = smul.addr %s446, 4
      %s448 = scalar_lea.vmem %s1, %s447
      %p449 = scmp.lt.s32.totalorder %s25, 1
      %s450 = scalar_select %p449, %s25, 1
      %s451 = smul.addr %s450, 3
      %s452 = scalar_lea.vmem %s2, %s451
      %p453 = scmp.lt.s32.totalorder %s25, 1
      %s454 = scalar_select %p453, %s25, 1
      %s455 = smul.addr %s454, 16
      %s456 = smul.addr %s455, 4
      %s457 = scalar_lea.vmem %s3, %s456
      %p458 = scmp.lt.s32.totalorder %s25, 1
      %s459 = scalar_select %p458, %s25, 1
      %s460 = scalar_lea.vmem %s4, %s459
      %p461 = scmp.lt.s32.totalorder %s25, 1
      %s462 = scalar_select %p461, %s25, 1
      %s463 = smul.addr %s462, 32
      %s464 = smul.addr %s463, 4
      %s465 = scalar_lea.vmem %s5, %s464
      %p466 = scmp.lt.s32.totalorder %s25, 1
      %s467 = scalar_select %p466, %s25, 1
      %s468 = smul.addr %s467, 2
      %s469 = scalar_lea.vmem %s6, %s468
      %p470 = scmp.lt.s32.totalorder %s25, 1
      %s471 = scalar_select %p470, %s25, 1
      %s472 = smul.addr %s471, 32
      %s473 = smul.addr %s472, 4
      %s474 = scalar_lea.vmem %s7, %s473
      %p475 = scmp.lt.s32.totalorder %s25, 1
      %s476 = scalar_select %p475, %s25, 1
      %s477 = scalar_lea.vmem %s8, %s476
      %p478 = scmp.lt.s32.totalorder %s24, 1
      %s479 = scalar_select %p478, %s24, 1
      %s480 = smul.addr %s479, 8
      %s481 = scalar_lea.vmem %s9, %s480
      %p483 = scmp.eq.s32.totalorder %s25, 0
      // Predicated region
      $region57: #{sit_forward.1} parent=55 // pred_check
        %p484 = pneg %p483
      $region58: #{sit_forward.1} parent=55 // pred_check_branch
        %486 = sbr.rel (%p484) target = $region60
      $region59: #{sit_forward.1} parent=55 // pred_region
        %v487 = vld [vmem:[%s443] sm:$0xff]
        %488 = vst [vmem:[%s481] sm:$0xff] %v487
      $region60: #{sit_forward.1} parent=55 // pred_fallthru
        _
      %v489 = vld [vmem:[%s481] sm:$0xff]
      %490 = vadd.xlane.f32.xlu0 %v489
      %v491 = vpop.xlane.xlu0 %490
      %v492 = vrcp.pop 128.0
      %v493 = vmul.f32 %v491, %v492
      %v494 = vsub.f32 %v489, %v493
      %v495 = vmul.f32 %v494, %v494
      %496 = vadd.xlane.f32.xlu0 %v495
      %v497 = vpop.xlane.xlu0 %496
      %v498 = vmul.f32 %v497, %v492
      %v499 = vadd.f32 %v498, 1e-05
      %v500 = vrsqrt.pop %v499
      %v501 = vmul.f32 %v494, %v500
      %v502 = vld [vmem:[%s448] sm:$0xff]
      %v503 = vld [vmem:[%s448 + $0x8] sm:$0xf]
      %v504 = vld [vmem:[%s448 + $0xc] sm:$0xff]
      %v505 = vld [vmem:[%s448 + $0x14] sm:$0xf]
      %v506 = vld [vmem:[%s448 + $0x18] sm:$0xff]
      %v507 = vld [vmem:[%s448 + $0x20] sm:$0xf]
      %v508 = vld [vmem:[%s448 + $0x24] sm:$0xff]
      %v509 = vld [vmem:[%s448 + $0x2c] sm:$0xf]
      %v510 = vld [vmem:[%s448 + $0x30] sm:$0xff]
      %v511 = vld [vmem:[%s448 + $0x38] sm:$0xf]
      %v512 = vld [vmem:[%s448 + $0x3c] sm:$0xff]
      %v513 = vld [vmem:[%s448 + $0x44] sm:$0xf]
      %v514 = vld [vmem:[%s448 + $0x48] sm:$0xff]
      %v515 = vld [vmem:[%s448 + $0x50] sm:$0xf]
      %v516 = vld [vmem:[%s448 + $0x54] sm:$0xff]
      %v517 = vld [vmem:[%s448 + $0x5c] sm:$0xf]
      %v518 = vld [vmem:[%s448 + $0x60] sm:$0xff]
      %v519 = vld [vmem:[%s448 + $0x68] sm:$0xf]
      %v520 = vld [vmem:[%s448 + $0x6c] sm:$0xff]
      %v521 = vld [vmem:[%s448 + $0x74] sm:$0xf]
      %v522 = vld [vmem:[%s448 + $0x78] sm:$0xff]
      %v523 = vld [vmem:[%s448 + $0x80] sm:$0xf]
      %v524 = vld [vmem:[%s448 + $0x84] sm:$0xff]
      %v525 = vld [vmem:[%s448 + $0x8c] sm:$0xf]
      %v526 = vld [vmem:[%s448 + $0x90] sm:$0xff]
      %v527 = vld [vmem:[%s448 + $0x98] sm:$0xf]
      %v528 = vld [vmem:[%s448 + $0x9c] sm:$0xff]
      %v529 = vld [vmem:[%s448 + $0xa4] sm:$0xf]
      %v530 = vld [vmem:[%s448 + $0xa8] sm:$0xff]
      %v531 = vld [vmem:[%s448 + $0xb0] sm:$0xf]
      %v532 = vld [vmem:[%s448 + $0xb4] sm:$0xff]
      %v533 = vld [vmem:[%s448 + $0xbc] sm:$0xf]
      %v534 = vpack.c.bf16 %v501, %v501
      %v535 = vld [vmem:[%s452] sm:$0x7]
      %v537 = vlaneseq
      %v538 = vshrl.u32 %v537, 7
      %v539 = vsub.s32 0, %v538
      %v540 = vrot.slane %v535, %v539
      %v541 = vlaneseq
      %v542 = vshrl.u32 %v541, 7
      %v543 = vsub.s32 1, %v542
      %v544 = vrot.slane %v535, %v543
      %v545 = vlaneseq
      %v546 = vshrl.u32 %v545, 7
      %v547 = vsub.s32 2, %v546
      %v548 = vrot.slane %v535, %v547
      %v584 = vunpack.c.l.b16 %v502
      %v585 = vunpack.c.h.b16 %v502
      %v586 = vunpack.c.l.b16 %v503
      %v587 = vunpack.c.l.b16 %v504
      %v588 = vunpack.c.h.b16 %v504
      %v589 = vunpack.c.l.b16 %v505
      %v590 = vunpack.c.l.b16 %v506
      %v591 = vunpack.c.h.b16 %v506
      %v592 = vunpack.c.l.b16 %v507
      %v593 = vunpack.c.l.b16 %v508
      %v594 = vunpack.c.h.b16 %v508
      %v595 = vunpack.c.l.b16 %v509
      %v596 = vunpack.c.l.b16 %v510
      %v597 = vunpack.c.h.b16 %v510
      %v598 = vunpack.c.l.b16 %v511
      %v599 = vunpack.c.l.b16 %v512
      %v600 = vunpack.c.h.b16 %v512
      %v601 = vunpack.c.l.b16 %v513
      %v602 = vunpack.c.l.b16 %v514
      %v603 = vunpack.c.h.b16 %v514
      %v604 = vunpack.c.l.b16 %v515
      %v605 = vunpack.c.l.b16 %v516
      %v606 = vunpack.c.h.b16 %v516
      %v607 = vunpack.c.l.b16 %v517
      %v608 = vunpack.c.l.b16 %v518
      %v609 = vunpack.c.h.b16 %v518
      %v610 = vunpack.c.l.b16 %v519
      %v611 = vunpack.c.l.b16 %v520
      %v612 = vunpack.c.h.b16 %v520
      %v613 = vunpack.c.l.b16 %v521
      %v614 = vunpack.c.l.b16 %v522
      %v615 = vunpack.c.h.b16 %v522
      %v616 = vunpack.c.l.b16 %v523
      %v617 = vunpack.c.l.b16 %v524
      %v618 = vunpack.c.h.b16 %v524
      %v619 = vunpack.c.l.b16 %v525
      %v620 = vunpack.c.l.b16 %v526
      %v621 = vunpack.c.h.b16 %v526
      %v622 = vunpack.c.l.b16 %v527
      %v623 = vunpack.c.l.b16 %v528
      %v624 = vunpack.c.h.b16 %v528
      %v625 = vunpack.c.l.b16 %v529
      %v626 = vunpack.c.l.b16 %v530
      %v627 = vunpack.c.h.b16 %v530
      %v628 = vunpack.c.l.b16 %v531
      %v629 = vunpack.c.l.b16 %v532
      %v630 = vunpack.c.h.b16 %v532
      %v631 = vunpack.c.l.b16 %v533
      %v632 = vpack.c.b16 %v587, %v584
      %v633 = vpack.c.b16 %v588, %v585
      %v634 = vpack.c.b16 %v589, %v586
      %v635 = vpack.c.b16 %v593, %v590
      %v636 = vpack.c.b16 %v594, %v591
      %v637 = vpack.c.b16 %v595, %v592
      %v638 = vpack.c.b16 %v599, %v596
      %v639 = vpack.c.b16 %v600, %v597
      %v640 = vpack.c.b16 %v601, %v598
      %v641 = vpack.c.b16 %v605, %v602
      %v642 = vpack.c.b16 %v606, %v603
      %v643 = vpack.c.b16 %v607, %v604
      %v644 = vpack.c.b16 %v611, %v608
      %v645 = vpack.c.b16 %v612, %v609
      %v646 = vpack.c.b16 %v613, %v610
      %v647 = vpack.c.b16 %v617, %v614
      %v648 = vpack.c.b16 %v618, %v615
      %v649 = vpack.c.b16 %v619, %v616
      %v650 = vpack.c.b16 %v623, %v620
      %v651 = vpack.c.b16 %v624, %v621
      %v652 = vpack.c.b16 %v625, %v622
      %v653 = vpack.c.b16 %v629, %v626
      %v654 = vpack.c.b16 %v630, %v627
      %v655 = vpack.c.b16 %v631, %v628
      %680 = vmatprep.subr.bf16.mxu0 %v654
      %681 = vmatpush1.bf16.msra.mxu0 %v653
      %682 = vmatprep.subr.bf16.mxu0 %v651
      %683 = vmatpush1.bf16.msra.mxu0 %v650
      %684 = vmatprep.subr.bf16.mxu0 %v648
      %685 = vmatpush1.bf16.msra.mxu0 %v647
      %686 = vmatprep.subr.bf16.mxu0 %v645
      %687 = vmatpush1.bf16.msra.mxu0 %v644
      %688 = vmatprep.subr.bf16.mxu0 %v642
      %689 = vmatpush1.bf16.msra.mxu0 %v641
      %690 = vmatprep.subr.bf16.mxu0 %v639
      %691 = vmatpush1.bf16.msra.mxu0 %v638
      %692 = vmatprep.subr.bf16.mxu0 %v636
      %693 = vmatpush1.bf16.msra.mxu0 %v635
      %694 = vmatprep.subr.bf16.mxu0 %v633
      %695 = vmatpush1.bf16.msra.mxu0 %v632
      %696 = vmatprep.subr.bf16.mxu0 0
      %697 = vmatpush2.bf16.msra.mxu0 0
      %698 = vmatprep.subr.bf16.mxu0 0
      %699 = vmatpush2.bf16.msra.mxu0 0
      %700 = vmatprep.subr.bf16.mxu0 0
      %701 = vmatpush2.bf16.msra.mxu0 0
      %702 = vmatprep.subr.bf16.mxu0 0
      %703 = vmatpush2.bf16.msra.mxu0 0
      %704 = vmatprep.subr.bf16.mxu0 0
      %705 = vmatpush2.bf16.msra.mxu0 0
      %706 = vmatprep.subr.bf16.mxu0 0
      %707 = vmatpush2.bf16.msra.mxu0 0
      %708 = vmatprep.subr.bf16.mxu0 0
      %709 = vmatpush2.bf16.msra.mxu0 0
      %710 = vmatprep.subr.bf16.mxu0 0
      %711 = vmatpush2.bf16.msra.mxu0 0
      %712 = vmatprep.mubr.bf16.mxu0 0
      %713 = vmatmul.mubr.bf16.gmra.mxu0 %v534
      %v714 = vpop.f32.mrf.mxu0
      %v715 = vadd.f32 %v540, %v714
      %v716 = vpop.f32.mrf.mxu0
      %v717 = vadd.f32 %v544, %v716
      %v718 = vpop.f32.mrf.mxu0
      %v719 = vpop.f32.mrf.mxu0
      %720 = vdwg.mxu0
      %721 = vmatprep.subr.bf16.mxu0 0
      %722 = vmatpush1.bf16.msra.mxu0 %v655
      %723 = vmatprep.subr.bf16.mxu0 0
      %724 = vmatpush1.bf16.msra.mxu0 %v652
      %725 = vmatprep.subr.bf16.mxu0 0
      %726 = vmatpush1.bf16.msra.mxu0 %v649
      %727 = vmatprep.subr.bf16.mxu0 0
      %728 = vmatpush1.bf16.msra.mxu0 %v646
      %729 = vmatprep.subr.bf16.mxu0 0
      %730 = vmatpush1.bf16.msra.mxu0 %v643
      %731 = vmatprep.subr.bf16.mxu0 0
      %732 = vmatpush1.bf16.msra.mxu0 %v640
      %733 = vmatprep.subr.bf16.mxu0 0
      %734 = vmatpush1.bf16.msra.mxu0 %v637
      %735 = vmatprep.subr.bf16.mxu0 0
      %736 = vmatpush1.bf16.msra.mxu0 %v634
      %737 = vmatprep.subr.bf16.mxu0 0
      %738 = vmatpush2.bf16.msra.mxu0 0
      %739 = vmatprep.subr.bf16.mxu0 0
      %740 = vmatpush2.bf16.msra.mxu0 0
      %741 = vmatprep.subr.bf16.mxu0 0
      %742 = vmatpush2.bf16.msra.mxu0 0
      %743 = vmatprep.subr.bf16.mxu0 0
      %744 = vmatpush2.bf16.msra.mxu0 0
      %745 = vmatprep.subr.bf16.mxu0 0
      %746 = vmatpush2.bf16.msra.mxu0 0
      %747 = vmatprep.subr.bf16.mxu0 0
      %748 = vmatpush2.bf16.msra.mxu0 0
      %749 = vmatprep.subr.bf16.mxu0 0
      %750 = vmatpush2.bf16.msra.mxu0 0
      %751 = vmatprep.subr.bf16.mxu0 0
      %752 = vmatpush2.bf16.msra.mxu0 0
      %753 = vmatprep.mubr.bf16.mxu0 0
      %754 = vmatmul.mubr.bf16.gmra.mxu0 %v534
      %v755 = vpop.f32.mrf.mxu0
      %v756 = vadd.f32 %v548, %v755
      %v757 = vpop.f32.mrf.mxu0
      %v758 = vpop.f32.mrf.mxu0
      %v759 = vpop.f32.mrf.mxu0
      %760 = vdwg.mxu0
      %v761 = vlaneseq
      %v762 = vand.u32 %v761, 127
      %vm763 = vcmp.lt.s32.totalorder %v762, 7
      %v764 = vpack.c.bf16 %v715, %v715
      %v765 = vpack.c.bf16 %v717, %v717
      %vm766 = vcmask 523264
      %v768 = vsel %vm766, %v764, 0
      %v771 = vsel %vm766, %v765, 0
      %773 = vmatprep.subr.bf16.mxu0 0
      %774 = vmatpush1.bf16.xpose.msra.mxu0 0
      %775 = vmatprep.subr.bf16.mxu0 0
      %776 = vmatpush1.bf16.xpose.msra.mxu0 0
      %777 = vmatprep.subr.bf16.mxu0 0
      %778 = vmatpush1.bf16.xpose.msra.mxu0 0
      %779 = vmatprep.subr.bf16.mxu0 0
      %780 = vmatpush1.bf16.xpose.msra.mxu0 0
      %781 = vmatprep.subr.bf16.mxu0 0
      %782 = vmatpush1.bf16.xpose.msra.mxu0 0
      %783 = vmatprep.subr.bf16.mxu0 0
      %784 = vmatpush1.bf16.xpose.msra.mxu0 0
      %785 = vmatprep.subr.bf16.mxu0 0
      %786 = vmatpush1.bf16.xpose.msra.mxu0 0
      %787 = vmatprep.subr.bf16.mxu0 0
      %788 = vmatpush1.bf16.xpose.msra.mxu0 %v771
      %789 = vmatprep.subr.bf16.mxu0 0
      %790 = vmatpush2.bf16.xpose.msra.mxu0 0
      %791 = vmatprep.subr.bf16.mxu0 0
      %792 = vmatpush2.bf16.xpose.msra.mxu0 0
      %793 = vmatprep.subr.bf16.mxu0 0
      %794 = vmatpush2.bf16.xpose.msra.mxu0 0
      %795 = vmatprep.subr.bf16.mxu0 0
      %796 = vmatpush2.bf16.xpose.msra.mxu0 0
      %797 = vmatprep.subr.bf16.mxu0 0
      %798 = vmatpush2.bf16.xpose.msra.mxu0 0
      %799 = vmatprep.subr.bf16.mxu0 0
      %800 = vmatpush2.bf16.xpose.msra.mxu0 0
      %801 = vmatprep.subr.bf16.mxu0 0
      %802 = vmatpush2.bf16.xpose.msra.mxu0 0
      %803 = vmatprep.subr.bf16.mxu0 0
      %804 = vmatpush2.bf16.xpose.msra.mxu0 0
      %805 = vmatprep.mubr.bf16.mxu0 0
      %806 = vmatmul.mubr.bf16.gmra.mxu0 %v768
      %v807 = vpop.f32.mrf.mxu0
      %v808 = vadd.f32 0.0, %v807
      %v809 = vpop.f32.mrf.mxu0
      %v810 = vpop.f32.mrf.mxu0
      %v811 = vpop.f32.mrf.mxu0
      %812 = vdwg.mxu0
      %v813 = vmul.f32 %v808, 0.125
      %v814 = vsel %vm763, %v813, -1e+30
      %vm815 = vcmask 64512
      %v816 = vsel %vm815, %v814, -inf
      %817 = vmax.xlane.f32.xlu0 %v816
      %v818 = vpop.xlane.xlu0 %817
      %v819 = vsub.f32 %v814, %v818
      %v820 = vmul.f32 %v819, 1.442695
      %v821 = vpow.pop %v820
      %v822 = vsel %vm815, %v821, 0.0
      %823 = vadd.xlane.f32.xlu0 %v822
      %v824 = vpop.xlane.xlu0 %823
      %v825 = vrcp.pop %v824
      %v826 = vmul.f32 %v821, %v825
      %v827 = vpack.c.bf16 %v826, %v826
      %v828 = vpack.c.bf16 %v756, %v756
      %v830 = vsel %vm815, %v827, 0
      %vm832 = vcmask 1043456
      %v834 = vsel %vm832, %v828, 0
      %836 = vmatprep.subr.bf16.mxu0 0
      %837 = vmatpush1.bf16.msra.mxu0 0
      %838 = vmatprep.subr.bf16.mxu0 0
      %839 = vmatpush1.bf16.msra.mxu0 0
      %840 = vmatprep.subr.bf16.mxu0 0
      %841 = vmatpush1.bf16.msra.mxu0 0
      %842 = vmatprep.subr.bf16.mxu0 0
      %843 = vmatpush1.bf16.msra.mxu0 0
      %844 = vmatprep.subr.bf16.mxu0 0
      %845 = vmatpush1.bf16.msra.mxu0 0
      %846 = vmatprep.subr.bf16.mxu0 0
      %847 = vmatpush1.bf16.msra.mxu0 0
      %848 = vmatprep.subr.bf16.mxu0 0
      %849 = vmatpush1.bf16.msra.mxu0 0
      %850 = vmatprep.subr.bf16.mxu0 0
      %851 = vmatpush1.bf16.msra.mxu0 %v834
      %852 = vmatprep.subr.bf16.mxu0 0
      %853 = vmatpush2.bf16.msra.mxu0 0
      %854 = vmatprep.subr.bf16.mxu0 0
      %855 = vmatpush2.bf16.msra.mxu0 0
      %856 = vmatprep.subr.bf16.mxu0 0
      %857 = vmatpush2.bf16.msra.mxu0 0
      %858 = vmatprep.subr.bf16.mxu0 0
      %859 = vmatpush2.bf16.msra.mxu0 0
      %860 = vmatprep.subr.bf16.mxu0 0
      %861 = vmatpush2.bf16.msra.mxu0 0
      %862 = vmatprep.subr.bf16.mxu0 0
      %863 = vmatpush2.bf16.msra.mxu0 0
      %864 = vmatprep.subr.bf16.mxu0 0
      %865 = vmatpush2.bf16.msra.mxu0 0
      %866 = vmatprep.subr.bf16.mxu0 0
      %867 = vmatpush2.bf16.msra.mxu0 0
      %868 = vmatprep.mubr.bf16.mxu0 0
      %869 = vmatmul.mubr.bf16.gmra.mxu0 %v830
      %v870 = vpop.f32.mrf.mxu0
      %v871 = vadd.f32 0.0, %v870
      %v872 = vpop.f32.mrf.mxu0
      %v873 = vpop.f32.mrf.mxu0
      %v874 = vpop.f32.mrf.mxu0
      %875 = vdwg.mxu0
      %876 = vst.msk [vmem:[#allocation2] sm:$0xff] %vm766, %v871
      %878 = vrot.lane.b32.xlu0 %v764, 64
      %v879 = vpop.permute.xlu0 %878
      %881 = vrot.lane.b32.xlu0 %v765, 64
      %v882 = vpop.permute.xlu0 %881
      %v884 = vsel %vm766, %v879, 0
      %v887 = vsel %vm766, %v882, 0
      %889 = vmatprep.subr.bf16.mxu0 0
      %890 = vmatpush1.bf16.xpose.msra.mxu0 0
      %891 = vmatprep.subr.bf16.mxu0 0
      %892 = vmatpush1.bf16.xpose.msra.mxu0 0
      %893 = vmatprep.subr.bf16.mxu0 0
      %894 = vmatpush1.bf16.xpose.msra.mxu0 0
      %895 = vmatprep.subr.bf16.mxu0 0
      %896 = vmatpush1.bf16.xpose.msra.mxu0 0
      %897 = vmatprep.subr.bf16.mxu0 0
      %898 = vmatpush1.bf16.xpose.msra.mxu0 0
      %899 = vmatprep.subr.bf16.mxu0 0
      %900 = vmatpush1.bf16.xpose.msra.mxu0 0
      %901 = vmatprep.subr.bf16.mxu0 0
      %902 = vmatpush1.bf16.xpose.msra.mxu0 0
      %903 = vmatprep.subr.bf16.mxu0 0
      %904 = vmatpush1.bf16.xpose.msra.mxu0 %v887
      %905 = vmatprep.subr.bf16.mxu0 0
      %906 = vmatpush2.bf16.xpose.msra.mxu0 0
      %907 = vmatprep.subr.bf16.mxu0 0
      %908 = vmatpush2.bf16.xpose.msra.mxu0 0
      %909 = vmatprep.subr.bf16.mxu0 0
      %910 = vmatpush2.bf16.xpose.msra.mxu0 0
      %911 = vmatprep.subr.bf16.mxu0 0
      %912 = vmatpush2.bf16.xpose.msra.mxu0 0
      %913 = vmatprep.subr.bf16.mxu0 0
      %914 = vmatpush2.bf16.xpose.msra.mxu0 0
      %915 = vmatprep.subr.bf16.mxu0 0
      %916 = vmatpush2.bf16.xpose.msra.mxu0 0
      %917 = vmatprep.subr.bf16.mxu0 0
      %918 = vmatpush2.bf16.xpose.msra.mxu0 0
      %919 = vmatprep.subr.bf16.mxu0 0
      %920 = vmatpush2.bf16.xpose.msra.mxu0 0
      %921 = vmatprep.mubr.bf16.mxu0 0
      %922 = vmatmul.mubr.bf16.gmra.mxu0 %v884
      %v923 = vpop.f32.mrf.mxu0
      %v924 = vadd.f32 0.0, %v923
      %v925 = vpop.f32.mrf.mxu0
      %v926 = vpop.f32.mrf.mxu0
      %v927 = vpop.f32.mrf.mxu0
      %928 = vdwg.mxu0
      %v929 = vmul.f32 %v924, 0.125
      %v930 = vsel %vm763, %v929, -1e+30
      %v931 = vsel %vm815, %v930, -inf
      %932 = vmax.xlane.f32.xlu0 %v931
      %v933 = vpop.xlane.xlu0 %932
      %v934 = vsub.f32 %v930, %v933
      %v935 = vmul.f32 %v934, 1.442695
      %v936 = vpow.pop %v935
      %v937 = vsel %vm815, %v936, 0.0
      %938 = vadd.xlane.f32.xlu0 %v937
      %v939 = vpop.xlane.xlu0 %938
      %v940 = vrcp.pop %v939
      %v941 = vmul.f32 %v936, %v940
      %v942 = vpack.c.bf16 %v941, %v941
      %944 = vrot.lane.b32.xlu0 %v828, 64
      %v945 = vpop.permute.xlu0 %944
      %v947 = vsel %vm815, %v942, 0
      %v950 = vsel %vm832, %v945, 0
      %952 = vmatprep.subr.bf16.mxu0 0
      %953 = vmatpush1.bf16.msra.mxu0 0
      %954 = vmatprep.subr.bf16.mxu0 0
      %955 = vmatpush1.bf16.msra.mxu0 0
      %956 = vmatprep.subr.bf16.mxu0 0
      %957 = vmatpush1.bf16.msra.mxu0 0
      %958 = vmatprep.subr.bf16.mxu0 0
      %959 = vmatpush1.bf16.msra.mxu0 0
      %960 = vmatprep.subr.bf16.mxu0 0
      %961 = vmatpush1.bf16.msra.mxu0 0
      %962 = vmatprep.subr.bf16.mxu0 0
      %963 = vmatpush1.bf16.msra.mxu0 0
      %964 = vmatprep.subr.bf16.mxu0 0
      %965 = vmatpush1.bf16.msra.mxu0 0
      %966 = vmatprep.subr.bf16.mxu0 0
      %967 = vmatpush1.bf16.msra.mxu0 %v950
      %968 = vmatprep.subr.bf16.mxu0 0
      %969 = vmatpush2.bf16.msra.mxu0 0
      %970 = vmatprep.subr.bf16.mxu0 0
      %971 = vmatpush2.bf16.msra.mxu0 0
      %972 = vmatprep.subr.bf16.mxu0 0
      %973 = vmatpush2.bf16.msra.mxu0 0
      %974 = vmatprep.subr.bf16.mxu0 0
      %975 = vmatpush2.bf16.msra.mxu0 0
      %976 = vmatprep.subr.bf16.mxu0 0
      %977 = vmatpush2.bf16.msra.mxu0 0
      %978 = vmatprep.subr.bf16.mxu0 0
      %979 = vmatpush2.bf16.msra.mxu0 0
      %980 = vmatprep.subr.bf16.mxu0 0
      %981 = vmatpush2.bf16.msra.mxu0 0
      %982 = vmatprep.subr.bf16.mxu0 0
      %983 = vmatpush2.bf16.msra.mxu0 0
      %984 = vmatprep.mubr.bf16.mxu0 0
      %985 = vmatmul.mubr.bf16.gmra.mxu0 %v947
      %v986 = vpop.f32.mrf.mxu0
      %v987 = vadd.f32 0.0, %v986
      %v988 = vpop.f32.mrf.mxu0
      %v989 = vpop.f32.mrf.mxu0
      %v990 = vpop.f32.mrf.mxu0
      %991 = vdwg.mxu0
      %993 = vrot.lane.b32.xlu0 %v987, 64
      %v994 = vpop.permute.xlu0 %993
      %vm996 = vcmask 1048064
      %997 = vst.msk [vmem:[#allocation2] sm:$0xff] %vm996, %v994
      %v998 = vld [vmem:[#allocation2] sm:$0xff]
      %v999 = vld [vmem:[%s457] sm:$0xf]
      %v1000 = vld [vmem:[%s457 + $0x4] sm:$0xf]
      %v1001 = vld [vmem:[%s457 + $0x8] sm:$0xf]
      %v1002 = vld [vmem:[%s457 + $0xc] sm:$0xf]
      %v1003 = vld [vmem:[%s457 + $0x10] sm:$0xf]
      %v1004 = vld [vmem:[%s457 + $0x14] sm:$0xf]
      %v1005 = vld [vmem:[%s457 + $0x18] sm:$0xf]
      %v1006 = vld [vmem:[%s457 + $0x1c] sm:$0xf]
      %v1007 = vld [vmem:[%s457 + $0x20] sm:$0xf]
      %v1008 = vld [vmem:[%s457 + $0x24] sm:$0xf]
      %v1009 = vld [vmem:[%s457 + $0x28] sm:$0xf]
      %v1010 = vld [vmem:[%s457 + $0x2c] sm:$0xf]
      %v1011 = vld [vmem:[%s457 + $0x30] sm:$0xf]
      %v1012 = vld [vmem:[%s457 + $0x34] sm:$0xf]
      %v1013 = vld [vmem:[%s457 + $0x38] sm:$0xf]
      %v1014 = vld [vmem:[%s457 + $0x3c] sm:$0xf]
      %v1015 = vpack.c.bf16 %v998, %v998
      %v1016 = vld [vmem:[%s460] sm:$0x1]
      %v1018 = vlaneseq
      %v1019 = vshrl.u32 %v1018, 7
      %v1020 = vsub.s32 0, %v1019
      %v1021 = vrot.slane %v1016, %v1020
      %v1039 = vunpack.c.l.b16 %v999
      %v1040 = vunpack.c.l.b16 %v1000
      %v1041 = vunpack.c.l.b16 %v1001
      %v1042 = vunpack.c.l.b16 %v1002
      %v1043 = vunpack.c.l.b16 %v1003
      %v1044 = vunpack.c.l.b16 %v1004
      %v1045 = vunpack.c.l.b16 %v1005
      %v1046 = vunpack.c.l.b16 %v1006
      %v1047 = vunpack.c.l.b16 %v1007
      %v1048 = vunpack.c.l.b16 %v1008
      %v1049 = vunpack.c.l.b16 %v1009
      %v1050 = vunpack.c.l.b16 %v1010
      %v1051 = vunpack.c.l.b16 %v1011
      %v1052 = vunpack.c.l.b16 %v1012
      %v1053 = vunpack.c.l.b16 %v1013
      %v1054 = vunpack.c.l.b16 %v1014
      %v1055 = vpack.c.b16 %v1040, %v1039
      %v1056 = vpack.c.b16 %v1042, %v1041
      %v1057 = vpack.c.b16 %v1044, %v1043
      %v1058 = vpack.c.b16 %v1046, %v1045
      %v1059 = vpack.c.b16 %v1048, %v1047
      %v1060 = vpack.c.b16 %v1050, %v1049
      %v1061 = vpack.c.b16 %v1052, %v1051
      %v1062 = vpack.c.b16 %v1054, %v1053
      %1071 = vmatprep.subr.bf16.mxu0 0
      %1072 = vmatpush1.bf16.msra.mxu0 %v1062
      %1073 = vmatprep.subr.bf16.mxu0 0
      %1074 = vmatpush1.bf16.msra.mxu0 %v1061
      %1075 = vmatprep.subr.bf16.mxu0 0
      %1076 = vmatpush1.bf16.msra.mxu0 %v1060
      %1077 = vmatprep.subr.bf16.mxu0 0
      %1078 = vmatpush1.bf16.msra.mxu0 %v1059
      %1079 = vmatprep.subr.bf16.mxu0 0
      %1080 = vmatpush1.bf16.msra.mxu0 %v1058
      %1081 = vmatprep.subr.bf16.mxu0 0
      %1082 = vmatpush1.bf16.msra.mxu0 %v1057
      %1083 = vmatprep.subr.bf16.mxu0 0
      %1084 = vmatpush1.bf16.msra.mxu0 %v1056
      %1085 = vmatprep.subr.bf16.mxu0 0
      %1086 = vmatpush1.bf16.msra.mxu0 %v1055
      %1087 = vmatprep.subr.bf16.mxu0 0
      %1088 = vmatpush2.bf16.msra.mxu0 0
      %1089 = vmatprep.subr.bf16.mxu0 0
      %1090 = vmatpush2.bf16.msra.mxu0 0
      %1091 = vmatprep.subr.bf16.mxu0 0
      %1092 = vmatpush2.bf16.msra.mxu0 0
      %1093 = vmatprep.subr.bf16.mxu0 0
      %1094 = vmatpush2.bf16.msra.mxu0 0
      %1095 = vmatprep.subr.bf16.mxu0 0
      %1096 = vmatpush2.bf16.msra.mxu0 0
      %1097 = vmatprep.subr.bf16.mxu0 0
      %1098 = vmatpush2.bf16.msra.mxu0 0
      %1099 = vmatprep.subr.bf16.mxu0 0
      %1100 = vmatpush2.bf16.msra.mxu0 0
      %1101 = vmatprep.subr.bf16.mxu0 0
      %1102 = vmatpush2.bf16.msra.mxu0 0
      %1103 = vmatprep.mubr.bf16.mxu0 0
      %1104 = vmatmul.mubr.bf16.gmra.mxu0 %v1015
      %v1105 = vpop.f32.mrf.mxu0
      %v1106 = vadd.f32 %v1021, %v1105
      %v1107 = vpop.f32.mrf.mxu0
      %v1108 = vpop.f32.mrf.mxu0
      %v1109 = vpop.f32.mrf.mxu0
      %1110 = vdwg.mxu0
      %v1111 = vadd.f32 %v1106, %v489
      %1112 = vadd.xlane.f32.xlu0 %v1111
      %v1113 = vpop.xlane.xlu0 %1112
      %v1114 = vmul.f32 %v1113, %v492
      %v1115 = vsub.f32 %v1111, %v1114
      %v1116 = vmul.f32 %v1115, %v1115
      %1117 = vadd.xlane.f32.xlu0 %v1116
      %v1118 = vpop.xlane.xlu0 %1117
      %v1119 = vmul.f32 %v1118, %v492
      %v1120 = vadd.f32 %v1119, 1e-05
      %v1121 = vrsqrt.pop %v1120
      %v1122 = vmul.f32 %v1115, %v1121
      %v1123 = vld [vmem:[%s465] sm:$0xff]
      %v1124 = vld [vmem:[%s465 + $0x8] sm:$0xff]
      %v1125 = vld [vmem:[%s465 + $0x10] sm:$0xff]
      %v1126 = vld [vmem:[%s465 + $0x18] sm:$0xff]
      %v1127 = vld [vmem:[%s465 + $0x20] sm:$0xff]
      %v1128 = vld [vmem:[%s465 + $0x28] sm:$0xff]
      %v1129 = vld [vmem:[%s465 + $0x30] sm:$0xff]
      %v1130 = vld [vmem:[%s465 + $0x38] sm:$0xff]
      %v1131 = vld [vmem:[%s465 + $0x40] sm:$0xff]
      %v1132 = vld [vmem:[%s465 + $0x48] sm:$0xff]
      %v1133 = vld [vmem:[%s465 + $0x50] sm:$0xff]
      %v1134 = vld [vmem:[%s465 + $0x58] sm:$0xff]
      %v1135 = vld [vmem:[%s465 + $0x60] sm:$0xff]
      %v1136 = vld [vmem:[%s465 + $0x68] sm:$0xff]
      %v1137 = vld [vmem:[%s465 + $0x70] sm:$0xff]
      %v1138 = vld [vmem:[%s465 + $0x78] sm:$0xff]
      %v1139 = vpack.c.bf16 %v1122, %v1122
      %v1140 = vld [vmem:[%s469] sm:$0x3]
      %v1142 = vlaneseq
      %v1143 = vshrl.u32 %v1142, 7
      %v1144 = vsub.s32 0, %v1143
      %v1145 = vrot.slane %v1140, %v1144
      %v1146 = vlaneseq
      %v1147 = vshrl.u32 %v1146, 7
      %v1148 = vsub.s32 1, %v1147
      %v1149 = vrot.slane %v1140, %v1148
      %v1168 = vunpack.c.l.b16 %v1123
      %v1169 = vunpack.c.h.b16 %v1123
      %v1170 = vunpack.c.l.b16 %v1124
      %v1171 = vunpack.c.h.b16 %v1124
      %v1172 = vunpack.c.l.b16 %v1125
      %v1173 = vunpack.c.h.b16 %v1125
      %v1174 = vunpack.c.l.b16 %v1126
      %v1175 = vunpack.c.h.b16 %v1126
      %v1176 = vunpack.c.l.b16 %v1127
      %v1177 = vunpack.c.h.b16 %v1127
      %v1178 = vunpack.c.l.b16 %v1128
      %v1179 = vunpack.c.h.b16 %v1128
      %v1180 = vunpack.c.l.b16 %v1129
      %v1181 = vunpack.c.h.b16 %v1129
      %v1182 = vunpack.c.l.b16 %v1130
      %v1183 = vunpack.c.h.b16 %v1130
      %v1184 = vunpack.c.l.b16 %v1131
      %v1185 = vunpack.c.h.b16 %v1131
      %v1186 = vunpack.c.l.b16 %v1132
      %v1187 = vunpack.c.h.b16 %v1132
      %v1188 = vunpack.c.l.b16 %v1133
      %v1189 = vunpack.c.h.b16 %v1133
      %v1190 = vunpack.c.l.b16 %v1134
      %v1191 = vunpack.c.h.b16 %v1134
      %v1192 = vunpack.c.l.b16 %v1135
      %v1193 = vunpack.c.h.b16 %v1135
      %v1194 = vunpack.c.l.b16 %v1136
      %v1195 = vunpack.c.h.b16 %v1136
      %v1196 = vunpack.c.l.b16 %v1137
      %v1197 = vunpack.c.h.b16 %v1137
      %v1198 = vunpack.c.l.b16 %v1138
      %v1199 = vunpack.c.h.b16 %v1138
      %v1200 = vpack.c.b16 %v1170, %v1168
      %v1201 = vpack.c.b16 %v1171, %v1169
      %v1202 = vpack.c.b16 %v1174, %v1172
      %v1203 = vpack.c.b16 %v1175, %v1173
      %v1204 = vpack.c.b16 %v1178, %v1176
      %v1205 = vpack.c.b16 %v1179, %v1177
      %v1206 = vpack.c.b16 %v1182, %v1180
      %v1207 = vpack.c.b16 %v1183, %v1181
      %v1208 = vpack.c.b16 %v1186, %v1184
      %v1209 = vpack.c.b16 %v1187, %v1185
      %v1210 = vpack.c.b16 %v1190, %v1188
      %v1211 = vpack.c.b16 %v1191, %v1189
      %v1212 = vpack.c.b16 %v1194, %v1192
      %v1213 = vpack.c.b16 %v1195, %v1193
      %v1214 = vpack.c.b16 %v1198, %v1196
      %v1215 = vpack.c.b16 %v1199, %v1197
      %1232 = vmatprep.subr.bf16.mxu0 %v1215
      %1233 = vmatpush1.bf16.msra.mxu0 %v1214
      %1234 = vmatprep.subr.bf16.mxu0 %v1213
      %1235 = vmatpush1.bf16.msra.mxu0 %v1212
      %1236 = vmatprep.subr.bf16.mxu0 %v1211
      %1237 = vmatpush1.bf16.msra.mxu0 %v1210
      %1238 = vmatprep.subr.bf16.mxu0 %v1209
      %1239 = vmatpush1.bf16.msra.mxu0 %v1208
      %1240 = vmatprep.subr.bf16.mxu0 %v1207
      %1241 = vmatpush1.bf16.msra.mxu0 %v1206
      %1242 = vmatprep.subr.bf16.mxu0 %v1205
      %1243 = vmatpush1.bf16.msra.mxu0 %v1204
      %1244 = vmatprep.subr.bf16.mxu0 %v1203
      %1245 = vmatpush1.bf16.msra.mxu0 %v1202
      %1246 = vmatprep.subr.bf16.mxu0 %v1201
      %1247 = vmatpush1.bf16.msra.mxu0 %v1200
      %1248 = vmatprep.subr.bf16.mxu0 0
      %1249 = vmatpush2.bf16.msra.mxu0 0
      %1250 = vmatprep.subr.bf16.mxu0 0
      %1251 = vmatpush2.bf16.msra.mxu0 0
      %1252 = vmatprep.subr.bf16.mxu0 0
      %1253 = vmatpush2.bf16.msra.mxu0 0
      %1254 = vmatprep.subr.bf16.mxu0 0
      %1255 = vmatpush2.bf16.msra.mxu0 0
      %1256 = vmatprep.subr.bf16.mxu0 0
      %1257 = vmatpush2.bf16.msra.mxu0 0
      %1258 = vmatprep.subr.bf16.mxu0 0
      %1259 = vmatpush2.bf16.msra.mxu0 0
      %1260 = vmatprep.subr.bf16.mxu0 0
      %1261 = vmatpush2.bf16.msra.mxu0 0
      %1262 = vmatprep.subr.bf16.mxu0 0
      %1263 = vmatpush2.bf16.msra.mxu0 0
      %1264 = vmatprep.mubr.bf16.mxu0 0
      %1265 = vmatmul.mubr.bf16.gmra.mxu0 %v1139
      %v1266 = vpop.f32.mrf.mxu0
      %v1267 = vadd.f32 %v1145, %v1266
      %v1268 = vpop.f32.mrf.mxu0
      %v1269 = vadd.f32 %v1149, %v1268
      %v1270 = vpop.f32.mrf.mxu0
      %v1271 = vpop.f32.mrf.mxu0
      %1272 = vdwg.mxu0
      %v1273 = vmul.f32 %v1267, 0.5
      %v1274 = vmul.f32 %v1269, 0.5
      %v1275 = vmul.f32 %v1267, 0.044715
      %v1276 = vmul.f32 %v1269, 0.044715
      %v1277 = vmul.f32 %v1275, %v1267
      %v1278 = vmul.f32 %v1276, %v1269
      %v1279 = vmul.f32 %v1277, %v1267
      %v1280 = vmul.f32 %v1278, %v1269
      %v1281 = vadd.f32 %v1267, %v1279
      %v1282 = vadd.f32 %v1269, %v1280
      %v1283 = vmul.f32 %v1281, 0.7978846
      %v1284 = vmul.f32 %v1282, 0.7978846
      %v1285 = vtanh.pop %v1283
      %v1286 = vtanh.pop %v1284
      %v1287 = vadd.f32 %v1285, 1.0
      %v1288 = vadd.f32 %v1286, 1.0
      %v1289 = vmul.f32 %v1273, %v1287
      %v1290 = vmul.f32 %v1274, %v1288
      %v1291 = vld [vmem:[%s474] sm:$0xf]
      %v1292 = vld [vmem:[%s474 + $0x4] sm:$0xf]
      %v1293 = vld [vmem:[%s474 + $0x8] sm:$0xf]
      %v1294 = vld [vmem:[%s474 + $0xc] sm:$0xf]
      %v1295 = vld [vmem:[%s474 + $0x10] sm:$0xf]
      %v1296 = vld [vmem:[%s474 + $0x14] sm:$0xf]
      %v1297 = vld [vmem:[%s474 + $0x18] sm:$0xf]
      %v1298 = vld [vmem:[%s474 + $0x1c] sm:$0xf]
      %v1299 = vld [vmem:[%s474 + $0x20] sm:$0xf]
      %v1300 = vld [vmem:[%s474 + $0x24] sm:$0xf]
      %v1301 = vld [vmem:[%s474 + $0x28] sm:$0xf]
      %v1302 = vld [vmem:[%s474 + $0x2c] sm:$0xf]
      %v1303 = vld [vmem:[%s474 + $0x30] sm:$0xf]
      %v1304 = vld [vmem:[%s474 + $0x34] sm:$0xf]
      %v1305 = vld [vmem:[%s474 + $0x38] sm:$0xf]
      %v1306 = vld [vmem:[%s474 + $0x3c] sm:$0xf]
      %v1307 = vld [vmem:[%s474 + $0x40] sm:$0xf]
      %v1308 = vld [vmem:[%s474 + $0x44] sm:$0xf]
      %v1309 = vld [vmem:[%s474 + $0x48] sm:$0xf]
      %v1310 = vld [vmem:[%s474 + $0x4c] sm:$0xf]
      %v1311 = vld [vmem:[%s474 + $0x50] sm:$0xf]
      %v1312 = vld [vmem:[%s474 + $0x54] sm:$0xf]
      %v1313 = vld [vmem:[%s474 + $0x58] sm:$0xf]
      %v1314 = vld [vmem:[%s474 + $0x5c] sm:$0xf]
      %v1315 = vld [vmem:[%s474 + $0x60] sm:$0xf]
      %v1316 = vld [vmem:[%s474 + $0x64] sm:$0xf]
      %v1317 = vld [vmem:[%s474 + $0x68] sm:$0xf]
      %v1318 = vld [vmem:[%s474 + $0x6c] sm:$0xf]
      %v1319 = vld [vmem:[%s474 + $0x70] sm:$0xf]
      %v1320 = vld [vmem:[%s474 + $0x74] sm:$0xf]
      %v1321 = vld [vmem:[%s474 + $0x78] sm:$0xf]
      %v1322 = vld [vmem:[%s474 + $0x7c] sm:$0xf]
      %v1323 = vpack.c.bf16 %v1289, %v1289
      %v1324 = vpack.c.bf16 %v1290, %v1290
      %v1325 = vld [vmem:[%s477] sm:$0x1]
      %v1327 = vlaneseq
      %v1328 = vshrl.u32 %v1327, 7
      %v1329 = vsub.s32 0, %v1328
      %v1330 = vrot.slane %v1325, %v1329
      %v1364 = vunpack.c.l.b16 %v1291
      %v1365 = vunpack.c.l.b16 %v1292
      %v1366 = vunpack.c.l.b16 %v1293
      %v1367 = vunpack.c.l.b16 %v1294
      %v1368 = vunpack.c.l.b16 %v1295
      %v1369 = vunpack.c.l.b16 %v1296
      %v1370 = vunpack.c.l.b16 %v1297
      %v1371 = vunpack.c.l.b16 %v1298
      %v1372 = vunpack.c.l.b16 %v1299
      %v1373 = vunpack.c.l.b16 %v1300
      %v1374 = vunpack.c.l.b16 %v1301
      %v1375 = vunpack.c.l.b16 %v1302
      %v1376 = vunpack.c.l.b16 %v1303
      %v1377 = vunpack.c.l.b16 %v1304
      %v1378 = vunpack.c.l.b16 %v1305
      %v1379 = vunpack.c.l.b16 %v1306
      %v1380 = vunpack.c.l.b16 %v1307
      %v1381 = vunpack.c.l.b16 %v1308
      %v1382 = vunpack.c.l.b16 %v1309
      %v1383 = vunpack.c.l.b16 %v1310
      %v1384 = vunpack.c.l.b16 %v1311
      %v1385 = vunpack.c.l.b16 %v1312
      %v1386 = vunpack.c.l.b16 %v1313
      %v1387 = vunpack.c.l.b16 %v1314
      %v1388 = vunpack.c.l.b16 %v1315
      %v1389 = vunpack.c.l.b16 %v1316
      %v1390 = vunpack.c.l.b16 %v1317
      %v1391 = vunpack.c.l.b16 %v1318
      %v1392 = vunpack.c.l.b16 %v1319
      %v1393 = vunpack.c.l.b16 %v1320
      %v1394 = vunpack.c.l.b16 %v1321
      %v1395 = vunpack.c.l.b16 %v1322
      %v1396 = vpack.c.b16 %v1365, %v1364
      %v1397 = vpack.c.b16 %v1367, %v1366
      %v1398 = vpack.c.b16 %v1369, %v1368
      %v1399 = vpack.c.b16 %v1371, %v1370
      %v1400 = vpack.c.b16 %v1373, %v1372
      %v1401 = vpack.c.b16 %v1375, %v1374
      %v1402 = vpack.c.b16 %v1377, %v1376
      %v1403 = vpack.c.b16 %v1379, %v1378
      %v1404 = vpack.c.b16 %v1381, %v1380
      %v1405 = vpack.c.b16 %v1383, %v1382
      %v1406 = vpack.c.b16 %v1385, %v1384
      %v1407 = vpack.c.b16 %v1387, %v1386
      %v1408 = vpack.c.b16 %v1389, %v1388
      %v1409 = vpack.c.b16 %v1391, %v1390
      %v1410 = vpack.c.b16 %v1393, %v1392
      %v1411 = vpack.c.b16 %v1395, %v1394
      %1428 = vmatprep.subr.bf16.mxu0 0
      %1429 = vmatpush1.bf16.msra.mxu0 %v1403
      %1430 = vmatprep.subr.bf16.mxu0 0
      %1431 = vmatpush1.bf16.msra.mxu0 %v1402
      %1432 = vmatprep.subr.bf16.mxu0 0
      %1433 = vmatpush1.bf16.msra.mxu0 %v1401
      %1434 = vmatprep.subr.bf16.mxu0 0
      %1435 = vmatpush1.bf16.msra.mxu0 %v1400
      %1436 = vmatprep.subr.bf16.mxu0 0
      %1437 = vmatpush1.bf16.msra.mxu0 %v1399
      %1438 = vmatprep.subr.bf16.mxu0 0
      %1439 = vmatpush1.bf16.msra.mxu0 %v1398
      %1440 = vmatprep.subr.bf16.mxu0 0
      %1441 = vmatpush1.bf16.msra.mxu0 %v1397
      %1442 = vmatprep.subr.bf16.mxu0 0
      %1443 = vmatpush1.bf16.msra.mxu0 %v1396
      %1444 = vmatprep.subr.bf16.mxu0 0
      %1445 = vmatpush2.bf16.msra.mxu0 %v1411
      %1446 = vmatprep.subr.bf16.mxu0 0
      %1447 = vmatpush2.bf16.msra.mxu0 %v1410
      %1448 = vmatprep.subr.bf16.mxu0 0
      %1449 = vmatpush2.bf16.msra.mxu0 %v1409
      %1450 = vmatprep.subr.bf16.mxu0 0
      %1451 = vmatpush2.bf16.msra.mxu0 %v1408
      %1452 = vmatprep.subr.bf16.mxu0 0
      %1453 = vmatpush2.bf16.msra.mxu0 %v1407
      %1454 = vmatprep.subr.bf16.mxu0 0
      %1455 = vmatpush2.bf16.msra.mxu0 %v1406
      %1456 = vmatprep.subr.bf16.mxu0 0
      %1457 = vmatpush2.bf16.msra.mxu0 %v1405
      %1458 = vmatprep.subr.bf16.mxu0 0
      %1459 = vmatpush2.bf16.msra.mxu0 %v1404
      %1460 = vmatprep.mubr.bf16.mxu0 %v1324
      %1461 = vmatmul.mubr.bf16.gmra.mxu0 %v1323
      %v1462 = vpop.f32.mrf.mxu0
      %v1463 = vadd.f32 %v1330, %v1462
      %v1464 = vpop.f32.mrf.mxu0
      %v1465 = vpop.f32.mrf.mxu0
      %v1466 = vpop.f32.mrf.mxu0
      %1467 = vdwg.mxu0
      %v1468 = vadd.f32 %v1463, %v1111
      %1469 = vst [vmem:[%s481] sm:$0xff] %v1468
      %p1470 = scmp.lt.s32.totalorder %s24, 1
      %s1471 = scalar_select %p1470, %s24, 1
      %s1472 = smul.addr %s1471, 8
      %s1473 = scalar_lea.vmem %s9, %s1472
      // Predicated region
      $region61: #{sit_forward.1} parent=55 // pred_check
        %p1474 = pneg %p284
      $region62: #{sit_forward.1} parent=55 // pred_check_branch
        %1476 = sbr.rel (%p1474) target = $region64
      $region63: #{sit_forward.1} parent=55 // pred_region
        _
      $region64: #{sit_forward.1} parent=55 // pred_fallthru
        _
    $region56: #{sit_forward.1} parent=5 // pred_fallthru
      _
    %p1477 = scmp.le.s32.totalorder 2, %s15
    // Predicated region
    $region65: #{sit_forward.1} parent=5 // pred_check
      %p1478 = pneg %p1477
    $region66: #{sit_forward.1} parent=5 // pred_check_branch
      %1480 = sbr.rel (%p1478) target = $region68
    $region67: #{sit_forward.1} parent=5 // pred_region
      %s1481 = ssub.s32 %s15, 2
      // Predicated region
      $region69: #{sit_forward.1} parent=67 // pred_check
        %p1482 = pneg %p290
      $region70: #{sit_forward.1} parent=67 // pred_check_branch
        %1484 = sbr.rel (%p1482) target = $region72
      $region71: #{sit_forward.1} parent=67 // pred_region
        %p1485 = scmp.lt.s32.totalorder %s26, 1
        %s1486 = scalar_select %p1485, %s26, 1
        %s1487 = smul.addr %s1486, 8
        %s1488 = scalar_lea.vmem %s9, %s1487
      $region72: #{sit_forward.1} parent=67 // pred_fallthru
        _
    $region68: #{sit_forward.1} parent=5 // pred_fallthru
      _
  $region6: #{sit_forward.1} parent=0 // loop_footer
    %s19 = sadd.s32 1, %s15
  $region7: #{sit_forward.1} parent=0 // loop_footer_branch
    %14 = sbr.rel target = $region3
  $region8: #{sit_forward.1} parent=0 // loop_exit
    _

</llo_original>
